<compile_context>
chip_gen: v7x
topology: tpu7x:2x2x1
jax: 0.10.0
libtpu: 0.0.40
codegen_flags: <defaults>
</compile_context>

<pallas_src>
import jax
import jax.numpy as jnp
from jax.experimental import pallas as pl
from jax.experimental.pallas import tpu as pltpu


def _class_attn_kernel(x_ref, wq_ref, wkv_ref, wp_ref, bp_ref, hT_ref, h_ref,
                       o_ref):
    Bb, N, C = x_ref.shape
    H = h_ref.shape[0]

    x = x_ref[...]                                   # (Bb, N, C)
    x_flat = x.reshape(Bb * N, C)                    # layout-free: N%8==0, C%128==0

    # Fused K/V projection: (Bb*N, C) @ (C, 2C), f32 accumulation on the MXU.
    kv = jnp.dot(x_flat, wkv_ref[...], preferred_element_type=jnp.float32)
    kv = kv.reshape(Bb, N, 2 * C)
    k = kv[:, :, 0:C]                                # (Bb, N, C), f32
    v = kv[:, :, C:2 * C]                            # (Bb, N, C), f32

    # Q only for the class token (row 0); softmax scale already folded into Wq.
    q = jnp.dot(x[:, 0, :], wq_ref[...],
                preferred_element_type=jnp.float32)  # (Bb, C), f32

    # Per-head logits via one-hot head-mask matmul (bf16 operands, f32 acc):
    #   logits[b, n, h] = sum_{c in head h} q[b, c] * k[b, n, c]
    qk = k * q[:, None, :]                           # (Bb, N, C), f32
    logits = jnp.dot(qk.reshape(Bb * N, C).astype(jnp.bfloat16), hT_ref[...],
                     preferred_element_type=jnp.float32).reshape(Bb, N, H)

    # Softmax over keys (axis=1), f32; EUP approximate reciprocal for the norm.
    m = jnp.max(logits, axis=1, keepdims=True)       # (Bb, 1, H)
    p = jnp.exp(logits - m)                          # (Bb, N, H)
    denom = jnp.sum(p, axis=1, keepdims=True)        # (Bb, 1, H)
    p = p * pl.reciprocal(denom, approx=True)        # (Bb, N, H)

    # Broadcast each head's attention weights back to its channels (bf16
    # one-hot matmul), then do the weighted sum over keys.
    p_full = jnp.dot(p.reshape(Bb * N, H).astype(jnp.bfloat16), h_ref[...],
                     preferred_element_type=jnp.float32).reshape(Bb, N, C)
    ctx = jnp.sum(p_full * v, axis=1)                # (Bb, C), f32

    # Output projection (+ bias); cast ctx to the weight dtype so bf16 callers
    # get bf16 MXU throughput, accumulation stays f32.
    out = jnp.dot(ctx.astype(wp_ref.dtype), wp_ref[...],
                  preferred_element_type=jnp.float32)
    out = out + bp_ref[...].astype(jnp.float32)      # (Bb, C) + (1, C)
    o_ref[...] = out.astype(o_ref.dtype)


def _vmem_capacity_bytes() -> int:
    """Physical VMEM per TensorCore; conservative fallback if the query fails."""
    try:
        return int(pltpu.get_tpu_info().vmem_capacity_bytes)
    except Exception:
        return 64 << 20   # v7x per-TC size: a safe lower bound everywhere


def _pick_block_b(B: int, N: int, vmem_cap: int) -> int:
    """Batch elements per grid step.

    Keeps the (block_b, C) output block sublane-dense (block_b == B or a
    multiple of 8).  On small-VMEM / 2-TC chips (v7x, 64 MiB) target ~512 rows
    per step and prefer an even grid so the 'parallel' axis splits evenly
    across both TensorCores.  On 128-MiB single-TC chips (v5e/v6e) just take
    the biggest block up to ~2048 rows (no multi-step requirement).
    """
    small_vmem = vmem_cap <= (64 << 20)
    row_cap = 512 if small_vmem else 2048
    divisors = [d for d in range(1, B + 1) if B % d == 0]
    aligned = [d for d in divisors if d == B or d % 8 == 0]
    good = [d for d in aligned if d * N <= row_cap] or [min(aligned)]
    if small_vmem:
        even = [d for d in good if (B // d) % 2 == 0]
        if even:
            return max(even)
    return max(good)


def class_attention(x, wq, wk, wv, wp, bp, *, num_heads: int,
                    block_b: int | None = None):
    B, N, C = x.shape
    assert C % num_heads == 0
    head_dim = C // num_heads
    scale = float(head_dim) ** -0.5

    # The in-kernel (Bb, N, C) <-> (Bb*N, C) flatten is layout-free only when
    # tile-aligned.  TODO(synk): pad N and mask padded keys to -inf before the
    # softmax (and exclude them from the denom) for the general CaiT N=197 case.
    assert N % 8 == 0 and C % 128 == 0, "kernel requires N % 8 == 0 and C % 128 == 0"

    vmem_cap = _vmem_capacity_bytes()
    if block_b is None:
        block_b = _pick_block_b(B, N, vmem_cap)
    assert B % block_b == 0
    grid_b = B // block_b

    # NOTE: in a real module these constants would be built once at init time.
    # Q weight with the softmax scale folded in; fused K/V weight (C, 2C).
    wq_s = (wq.astype(jnp.float32) * scale).astype(wq.dtype)
    wkv = jnp.concatenate([wk, wv], axis=1)
    bp2 = bp.reshape(1, C)

    # Head one-hot masks (exact 0/1, stored in bf16 for cheap MXU passes).
    head_of_chan = jnp.arange(C, dtype=jnp.int32) // head_dim
    hmask_T = (head_of_chan[:, None]
               == jnp.arange(num_heads, dtype=jnp.int32)[None, :]
               ).astype(jnp.bfloat16)                          # (C, H)
    hmask = hmask_T.T                                          # (H, C)

    # Rough VMEM estimate (double-buffered x/out, weights, f32 temporaries).
    itemsize = jnp.dtype(x.dtype).itemsize
    w_itemsize = jnp.dtype(wq.dtype).itemsize
    weight_bytes = 4 * C * C * w_itemsize + C * w_itemsize + 2 * C * num_heads * 2
    x_bytes = 2 * block_b * N * C * itemsize
    o_bytes = 2 * block_b * C * itemsize
    tmp_bytes = 6 * block_b * N * C * 4
    vmem_est = 2 * weight_bytes + x_bytes + o_bytes + tmp_bytes
    # Always set the scoped-VMEM limit (v5e's default is only 16 MiB), capped
    # at the physical per-core VMEM minus headroom so it is valid on v7x.
    vmem_limit = int(min(vmem_cap - (8 << 20),
                         max(vmem_est + (4 << 20), 32 << 20)))

    def _call(single_buffer_consts: bool):
        # Constant-index operands never benefit from the second pipeline
        # buffer -> single-buffer them (pure VMEM savings, zero perf cost).
        w_kwargs = ({"pipeline_mode": pl.Buffered(1)}
                    if single_buffer_consts else {})
        return pl.pallas_call(
            _class_attn_kernel,
            out_shape=jax.ShapeDtypeStruct((B, C), x.dtype),
            grid_spec=pltpu.PrefetchScalarGridSpec(
                num_scalar_prefetch=0,
                grid=(grid_b,),
                in_specs=[
                    pl.BlockSpec((block_b, N, C), lambda b: (b, 0, 0)),          # x
                    pl.BlockSpec((C, C), lambda b: (0, 0), **w_kwargs),          # Wq (scaled)
                    pl.BlockSpec((C, 2 * C), lambda b: (0, 0), **w_kwargs),      # fused Wkv
                    pl.BlockSpec((C, C), lambda b: (0, 0), **w_kwargs),          # Wproj
                    pl.BlockSpec((1, C), lambda b: (0, 0), **w_kwargs),          # proj bias
                    pl.BlockSpec((C, num_heads), lambda b: (0, 0), **w_kwargs),  # head mask^T
                    pl.BlockSpec((num_heads, C), lambda b: (0, 0), **w_kwargs),  # head mask
                ],
                out_specs=pl.BlockSpec((block_b, C), lambda b: (b, 0)),
            ),
            compiler_params=pltpu.CompilerParams(
                dimension_semantics=("parallel",),
                vmem_limit_bytes=vmem_limit),
        )(x, wq_s, wkv, wp, bp2, hmask_T, hmask)

    try:
        out2d = _call(True)
    except Exception:
        # Fallback for jax versions that reject BlockSpec(pipeline_mode=
        # pl.Buffered(1)): default double-buffering, identical results.
        out2d = _call(False)

    # Lane/sublane-dense (B, C) output from the kernel; add the token dim here.
    return out2d.reshape(B, 1, C)


def class_attention_ref(x, wq, wk, wv, wp, bp, *, num_heads: int):
    """Plain-JAX replica of the PyTorch forward, for verification."""
    B, N, C = x.shape
    hd = C // num_heads
    scale = hd ** (-0.5)
    q = (x[:, 0] @ wq).reshape(B, 1, num_heads, hd).transpose(0, 2, 1, 3) * scale
    k = (x @ wk).reshape(B, N, num_heads, hd).transpose(0, 2, 1, 3)
    v = (x @ wv).reshape(B, N, num_heads, hd).transpose(0, 2, 1, 3)
    attn = jax.nn.softmax(q @ jnp.swapaxes(k, -2, -1), axis=-1)
    x_cls = (attn @ v).transpose(0, 2, 1, 3).reshape(B, 1, C)
    return x_cls @ wp + bp.reshape(1, 1, C)


if __name__ == "__main__":
    B, N, C = 2, 16, 128
    num_heads = 8           # head_dim = 16

    key = jax.random.PRNGKey(0)
    kx, kq, kk, kv, kp, kb = jax.random.split(key, 6)
    x = jax.random.normal(kx, (B, N, C), dtype=jnp.float32)
    # Deterministic synthetic weights (qkv_bias=False by default; proj has bias).
    wq = 0.05 * jax.random.normal(kq, (C, C), dtype=jnp.float32)   # (in, out)
    wk = 0.05 * jax.random.normal(kk, (C, C), dtype=jnp.float32)
    wv = 0.05 * jax.random.normal(kv, (C, C), dtype=jnp.float32)
    wp = 0.05 * jax.random.normal(kp, (C, C), dtype=jnp.float32)
    bp = 0.05 * jax.random.normal(kb, (C,), dtype=jnp.float32)

    # --- f32 activations/weights ------------------------------------------
    out = class_attention(x, wq, wk, wv, wp, bp, num_heads=num_heads)
    out = jax.block_until_ready(out)
    ref = class_attention_ref(x, wq, wk, wv, wp, bp, num_heads=num_heads)
    assert out.shape == (B, 1, C)
    # Tolerance covers the bf16 head-mask matmuls and the EUP approximate
    # reciprocal in the softmax normalization (inference-class numerics).
    assert jnp.allclose(out, ref, atol=1e-2, rtol=1e-2), \
        f"f32 max err {jnp.max(jnp.abs(out - ref))}"

    # --- bf16 path (bf16 operands on the MXU, f32 accumulation) ------------
    xb = x.astype(jnp.bfloat16)
    wqb, wkb, wvb, wpb = (w.astype(jnp.bfloat16) for w in (wq, wk, wv, wp))
    bpb = bp.astype(jnp.bfloat16)
    out_b = class_attention(xb, wqb, wkb, wvb, wpb, bpb, num_heads=num_heads)
    out_b = jax.block_until_ready(out_b)
    ref_b = class_attention_ref(xb.astype(jnp.float32), wqb.astype(jnp.float32),
                                wkb.astype(jnp.float32), wvb.astype(jnp.float32),
                                wpb.astype(jnp.float32), bpb.astype(jnp.float32),
                                num_heads=num_heads)
    assert out_b.shape == (B, 1, C)
    assert jnp.allclose(out_b.astype(jnp.float32), ref_b, atol=5e-2, rtol=5e-2), \
        f"bf16 max err {jnp.max(jnp.abs(out_b.astype(jnp.float32) - ref_b))}"

    print("KERNEL_OK")
</pallas_src>

<mosaic_0001>
module attributes {stable_mosaic.version = 11 : i64} {
  func.func @_class_attn_kernel(%arg0: i32, %arg1: memref<2x16x128xf32, #tpu.memory_space<vmem>>, %arg2: memref<128x128xf32, #tpu.memory_space<vmem>>, %arg3: memref<128x256xf32, #tpu.memory_space<vmem>>, %arg4: memref<128x128xf32, #tpu.memory_space<vmem>>, %arg5: memref<1x128xf32, #tpu.memory_space<vmem>>, %arg6: memref<128x8xbf16, #tpu.memory_space<vmem>>, %arg7: memref<8x128xbf16, #tpu.memory_space<vmem>>, %arg8: memref<2x128xf32, #tpu.memory_space<vmem>>) attributes {dimension_semantics = [#tpu.dimension_semantics<parallel>], iteration_bounds = array<i64: 1>, scalar_prefetch = 0 : i64, scratch_operands = 0 : i64, tpu.core_type = #tpu.core_type<tc>, window_params = [{transform_indices = @transform_0, window_bounds = array<i64: 2, 16, 128>}, {pipeline_mode = #tpu.pipeline_mode<synchronous>, transform_indices = @transform_1, window_bounds = array<i64: 128, 128>}, {pipeline_mode = #tpu.pipeline_mode<synchronous>, transform_indices = @transform_2, window_bounds = array<i64: 128, 256>}, {pipeline_mode = #tpu.pipeline_mode<synchronous>, transform_indices = @transform_3, window_bounds = array<i64: 128, 128>}, {pipeline_mode = #tpu.pipeline_mode<synchronous>, transform_indices = @transform_4, window_bounds = array<i64: 1, 128>}, {pipeline_mode = #tpu.pipeline_mode<synchronous>, transform_indices = @transform_5, window_bounds = array<i64: 128, 8>}, {pipeline_mode = #tpu.pipeline_mode<synchronous>, transform_indices = @transform_6, window_bounds = array<i64: 8, 128>}, {transform_indices = @transform_7, window_bounds = array<i64: 2, 128>}]} {
    %c0 = arith.constant 0 : index
    %c0_0 = arith.constant 0 : index
    %c0_1 = arith.constant 0 : index
    %0 = vector.load %arg1[%c0, %c0_0, %c0_1] : memref<2x16x128xf32, #tpu.memory_space<vmem>>, vector<2x16x128xf32>
    %1 = vector.shape_cast %0 : vector<2x16x128xf32> to vector<32x128xf32>
    %c0_2 = arith.constant 0 : index
    %c0_3 = arith.constant 0 : index
    %2 = vector.load %arg3[%c0_2, %c0_3] : memref<128x256xf32, #tpu.memory_space<vmem>>, vector<128x256xf32>
    %cst = arith.constant dense<0.000000e+00> : vector<32x256xf32>
    %3 = tpu.matmul %1, %2, %cst {dimension_numbers = #tpu.dot_dimension_numbers<[1], [0], [0], [1], [0, 0, 1, 1], [], []>} : vector<32x128xf32>, vector<128x256xf32>, vector<32x256xf32> -> vector<32x256xf32>
    %4 = vector.shape_cast %3 : vector<32x256xf32> to vector<2x16x256xf32>
    %5 = vector.extract_strided_slice %4 {offsets = [0, 0, 0], sizes = [2, 16, 128], strides = [1, 1, 1]} : vector<2x16x256xf32> to vector<2x16x128xf32>
    %6 = vector.extract_strided_slice %4 {offsets = [0, 0, 128], sizes = [2, 16, 128], strides = [1, 1, 1]} : vector<2x16x256xf32> to vector<2x16x128xf32>
    %7 = vector.extract_strided_slice %0 {offsets = [0, 0, 0], sizes = [2, 1, 128], strides = [1, 1, 1]} : vector<2x16x128xf32> to vector<2x1x128xf32>
    %8 = vector.shape_cast %7 : vector<2x1x128xf32> to vector<2x128xf32>
    %c0_4 = arith.constant 0 : index
    %c0_5 = arith.constant 0 : index
    %9 = vector.load %arg2[%c0_4, %c0_5] : memref<128x128xf32, #tpu.memory_space<vmem>>, vector<128x128xf32>
    %cst_6 = arith.constant dense<0.000000e+00> : vector<2x128xf32>
    %10 = tpu.matmul %8, %9, %cst_6 {dimension_numbers = #tpu.dot_dimension_numbers<[1], [0], [0], [1], [0, 0, 1, 1], [], []>} : vector<2x128xf32>, vector<128x128xf32>, vector<2x128xf32> -> vector<2x128xf32>
    %11 = vector.shape_cast %10 : vector<2x128xf32> to vector<2x1x128xf32>
    %12 = vector.broadcast %11 : vector<2x1x128xf32> to vector<2x16x128xf32>
    %13 = arith.mulf %5, %12 : vector<2x16x128xf32>
    %14 = vector.shape_cast %13 : vector<2x16x128xf32> to vector<32x128xf32>
    %15 = arith.truncf %14 : vector<32x128xf32> to vector<32x128xbf16>
    %c0_7 = arith.constant 0 : index
    %c0_8 = arith.constant 0 : index
    %16 = vector.load %arg6[%c0_7, %c0_8] : memref<128x8xbf16, #tpu.memory_space<vmem>>, vector<128x8xbf16>
    %cst_9 = arith.constant dense<0.000000e+00> : vector<32x8xf32>
    %17 = tpu.matmul %15, %16, %cst_9 {dimension_numbers = #tpu.dot_dimension_numbers<[1], [0], [0], [1], [0, 0, 1, 1], [], []>} : vector<32x128xbf16>, vector<128x8xbf16>, vector<32x8xf32> -> vector<32x8xf32>
    %18 = vector.shape_cast %17 : vector<32x8xf32> to vector<2x16x8xf32>
    %cst_10 = arith.constant dense<0xFF800000> : vector<2x8xf32>
    %19 = vector.multi_reduction <maximumf>, %18, %cst_10 [1] : vector<2x16x8xf32> to vector<2x8xf32>
    %20 = vector.shape_cast %19 : vector<2x8xf32> to vector<2x1x8xf32>
    %21 = vector.broadcast %20 : vector<2x1x8xf32> to vector<2x16x8xf32>
    %22 = arith.subf %18, %21 : vector<2x16x8xf32>
    %23 = math.exp %22 : vector<2x16x8xf32>
    %cst_11 = arith.constant dense<0.000000e+00> : vector<2x8xf32>
    %24 = vector.multi_reduction <add>, %23, %cst_11 [1] : vector<2x16x8xf32> to vector<2x8xf32>
    %25 = vector.shape_cast %24 : vector<2x8xf32> to vector<2x1x8xf32>
    %26 = tpu.reciprocal %25 {approx = true} : vector<2x1x8xf32> -> vector<2x1x8xf32>
    %27 = vector.broadcast %26 : vector<2x1x8xf32> to vector<2x16x8xf32>
    %28 = arith.mulf %23, %27 : vector<2x16x8xf32>
    %29 = vector.shape_cast %28 : vector<2x16x8xf32> to vector<32x8xf32>
    %30 = arith.truncf %29 : vector<32x8xf32> to vector<32x8xbf16>
    %c0_12 = arith.constant 0 : index
    %c0_13 = arith.constant 0 : index
    %31 = vector.load %arg7[%c0_12, %c0_13] : memref<8x128xbf16, #tpu.memory_space<vmem>>, vector<8x128xbf16>
    %cst_14 = arith.constant dense<0.000000e+00> : vector<32x128xf32>
    %32 = tpu.matmul %30, %31, %cst_14 {dimension_numbers = #tpu.dot_dimension_numbers<[1], [0], [0], [1], [0, 0, 1, 1], [], []>} : vector<32x8xbf16>, vector<8x128xbf16>, vector<32x128xf32> -> vector<32x128xf32>
    %33 = vector.shape_cast %32 : vector<32x128xf32> to vector<2x16x128xf32>
    %34 = arith.mulf %33, %6 : vector<2x16x128xf32>
    %cst_15 = arith.constant dense<0.000000e+00> : vector<2x128xf32>
    %35 = vector.multi_reduction <add>, %34, %cst_15 [1] : vector<2x16x128xf32> to vector<2x128xf32>
    %c0_16 = arith.constant 0 : index
    %c0_17 = arith.constant 0 : index
    %36 = vector.load %arg4[%c0_16, %c0_17] : memref<128x128xf32, #tpu.memory_space<vmem>>, vector<128x128xf32>
    %cst_18 = arith.constant dense<0.000000e+00> : vector<2x128xf32>
    %37 = tpu.matmul %35, %36, %cst_18 {dimension_numbers = #tpu.dot_dimension_numbers<[1], [0], [0], [1], [0, 0, 1, 1], [], []>} : vector<2x128xf32>, vector<128x128xf32>, vector<2x128xf32> -> vector<2x128xf32>
    %c0_19 = arith.constant 0 : index
    %c0_20 = arith.constant 0 : index
    %38 = vector.load %arg5[%c0_19, %c0_20] : memref<1x128xf32, #tpu.memory_space<vmem>>, vector<1x128xf32>
    %39 = vector.broadcast %38 : vector<1x128xf32> to vector<2x128xf32>
    %40 = arith.addf %37, %39 : vector<2x128xf32>
    %c0_21 = arith.constant 0 : index
    %c0_22 = arith.constant 0 : index
    %41 = vector.load %arg8[%c0_21, %c0_22] : memref<2x128xf32, #tpu.memory_space<vmem>>, vector<2x128xf32>
    tpu.vector_store %arg8[%c0_21, %c0_22], %40 {strides = array<i32>} : memref<2x128xf32, #tpu.memory_space<vmem>>, vector<2x128xf32>,
    return
  }
  func.func @transform_0(%arg0: i32) -> (i32, i32, i32) {
    %c0_i32 = arith.constant 0 : i32
    %c0_i32_0 = arith.constant 0 : i32
    %c0_i32_1 = arith.constant 0 : i32
    return %arg0, %c0_i32, %c0_i32_0 : i32, i32, i32
  }
  func.func @transform_1(%arg0: i32) -> (i32, i32) {
    %c0_i32 = arith.constant 0 : i32
    %c0_i32_0 = arith.constant 0 : i32
    %c0_i32_1 = arith.constant 0 : i32
    return %c0_i32, %c0_i32_0 : i32, i32
  }
  func.func @transform_2(%arg0: i32) -> (i32, i32) {
    %c0_i32 = arith.constant 0 : i32
    %c0_i32_0 = arith.constant 0 : i32
    %c0_i32_1 = arith.constant 0 : i32
    return %c0_i32, %c0_i32_0 : i32, i32
  }
  func.func @transform_3(%arg0: i32) -> (i32, i32) {
    %c0_i32 = arith.constant 0 : i32
    %c0_i32_0 = arith.constant 0 : i32
    %c0_i32_1 = arith.constant 0 : i32
    return %c0_i32, %c0_i32_0 : i32, i32
  }
  func.func @transform_4(%arg0: i32) -> (i32, i32) {
    %c0_i32 = arith.constant 0 : i32
    %c0_i32_0 = arith.constant 0 : i32
    %c0_i32_1 = arith.constant 0 : i32
    return %c0_i32, %c0_i32_0 : i32, i32
  }
  func.func @transform_5(%arg0: i32) -> (i32, i32) {
    %c0_i32 = arith.constant 0 : i32
    %c0_i32_0 = arith.constant 0 : i32
    %c0_i32_1 = arith.constant 0 : i32
    return %c0_i32, %c0_i32_0 : i32, i32
  }
  func.func @transform_6(%arg0: i32) -> (i32, i32) {
    %c0_i32 = arith.constant 0 : i32
    %c0_i32_0 = arith.constant 0 : i32
    %c0_i32_1 = arith.constant 0 : i32
    return %c0_i32, %c0_i32_0 : i32, i32
  }
  func.func @transform_7(%arg0: i32) -> (i32, i32) {
    %c0_i32 = arith.constant 0 : i32
    %c0_i32_0 = arith.constant 0 : i32
    return %arg0, %c0_i32 : i32, i32
  }
}

module attributes {stable_mosaic.version = 11 : i64} {
  func.func @_class_attn_kernel(%arg0: i32, %arg1: memref<2x16x128xf32, #tpu.memory_space<vmem>>, %arg2: memref<128x128xf32, #tpu.memory_space<vmem>>, %arg3: memref<128x256xf32, #tpu.memory_space<vmem>>, %arg4: memref<128x128xf32, #tpu.memory_space<vmem>>, %arg5: memref<1x128xf32, #tpu.memory_space<vmem>>, %arg6: memref<128x8xbf16, #tpu.memory_space<vmem>>, %arg7: memref<8x128xbf16, #tpu.memory_space<vmem>>, %arg8: memref<2x128xf32, #tpu.memory_space<vmem>>) attributes {dimension_semantics = [#tpu.dimension_semantics<parallel>], iteration_bounds = array<i64: 1>, scalar_prefetch = 0 : i64, scratch_operands = 0 : i64, tpu.core_type = #tpu.core_type<tc>, window_params = [{transform_indices = @transform_0, window_bounds = array<i64: 2, 16, 128>}, {pipeline_mode = #tpu.pipeline_mode<synchronous>, transform_indices = @transform_1, window_bounds = array<i64: 128, 128>}, {pipeline_mode = #tpu.pipeline_mode<synchronous>, transform_indices = @transform_2, window_bounds = array<i64: 128, 256>}, {pipeline_mode = #tpu.pipeline_mode<synchronous>, transform_indices = @transform_3, window_bounds = array<i64: 128, 128>}, {pipeline_mode = #tpu.pipeline_mode<synchronous>, transform_indices = @transform_4, window_bounds = array<i64: 1, 128>}, {pipeline_mode = #tpu.pipeline_mode<synchronous>, transform_indices = @transform_5, window_bounds = array<i64: 128, 8>}, {pipeline_mode = #tpu.pipeline_mode<synchronous>, transform_indices = @transform_6, window_bounds = array<i64: 8, 128>}, {transform_indices = @transform_7, window_bounds = array<i64: 2, 128>}]} {
    %c0 = arith.constant 0 : index
    %c0_0 = arith.constant 0 : index
    %c0_1 = arith.constant 0 : index
    %0 = vector.load %arg1[%c0, %c0_0, %c0_1] : memref<2x16x128xf32, #tpu.memory_space<vmem>>, vector<2x16x128xf32>
    %1 = vector.shape_cast %0 : vector<2x16x128xf32> to vector<32x128xf32>
    %c0_2 = arith.constant 0 : index
    %c0_3 = arith.constant 0 : index
    %2 = vector.load %arg3[%c0_2, %c0_3] : memref<128x256xf32, #tpu.memory_space<vmem>>, vector<128x256xf32>
    %cst = arith.constant dense<0.000000e+00> : vector<32x256xf32>
    %3 = tpu.matmul %1, %2, %cst {dimension_numbers = #tpu.dot_dimension_numbers<[1], [0], [0], [1], [0, 0, 1, 1], [], []>} : vector<32x128xf32>, vector<128x256xf32>, vector<32x256xf32> -> vector<32x256xf32>
    %4 = vector.shape_cast %3 : vector<32x256xf32> to vector<2x16x256xf32>
    %5 = vector.extract_strided_slice %4 {offsets = [0, 0, 0], sizes = [2, 16, 128], strides = [1, 1, 1]} : vector<2x16x256xf32> to vector<2x16x128xf32>
    %6 = vector.extract_strided_slice %4 {offsets = [0, 0, 128], sizes = [2, 16, 128], strides = [1, 1, 1]} : vector<2x16x256xf32> to vector<2x16x128xf32>
    %7 = vector.extract_strided_slice %0 {offsets = [0, 0, 0], sizes = [2, 1, 128], strides = [1, 1, 1]} : vector<2x16x128xf32> to vector<2x1x128xf32>
    %8 = vector.shape_cast %7 : vector<2x1x128xf32> to vector<2x128xf32>
    %c0_4 = arith.constant 0 : index
    %c0_5 = arith.constant 0 : index
    %9 = vector.load %arg2[%c0_4, %c0_5] : memref<128x128xf32, #tpu.memory_space<vmem>>, vector<128x128xf32>
    %cst_6 = arith.constant dense<0.000000e+00> : vector<2x128xf32>
    %10 = tpu.matmul %8, %9, %cst_6 {dimension_numbers = #tpu.dot_dimension_numbers<[1], [0], [0], [1], [0, 0, 1, 1], [], []>} : vector<2x128xf32>, vector<128x128xf32>, vector<2x128xf32> -> vector<2x128xf32>
    %11 = vector.shape_cast %10 : vector<2x128xf32> to vector<2x1x128xf32>
    %12 = vector.broadcast %11 : vector<2x1x128xf32> to vector<2x16x128xf32>
    %13 = arith.mulf %5, %12 : vector<2x16x128xf32>
    %14 = vector.shape_cast %13 : vector<2x16x128xf32> to vector<32x128xf32>
    %15 = arith.truncf %14 : vector<32x128xf32> to vector<32x128xbf16>
    %c0_7 = arith.constant 0 : index
    %c0_8 = arith.constant 0 : index
    %16 = vector.load %arg6[%c0_7, %c0_8] : memref<128x8xbf16, #tpu.memory_space<vmem>>, vector<128x8xbf16>
    %cst_9 = arith.constant dense<0.000000e+00> : vector<32x8xf32>
    %17 = tpu.matmul %15, %16, %cst_9 {dimension_numbers = #tpu.dot_dimension_numbers<[1], [0], [0], [1], [0, 0, 1, 1], [], []>} : vector<32x128xbf16>, vector<128x8xbf16>, vector<32x8xf32> -> vector<32x8xf32>
    %18 = vector.shape_cast %17 : vector<32x8xf32> to vector<2x16x8xf32>
    %cst_10 = arith.constant dense<0xFF800000> : vector<2x8xf32>
    %19 = vector.multi_reduction <maximumf>, %18, %cst_10 [1] : vector<2x16x8xf32> to vector<2x8xf32>
    %20 = vector.shape_cast %19 : vector<2x8xf32> to vector<2x1x8xf32>
    %21 = vector.broadcast %20 : vector<2x1x8xf32> to vector<2x16x8xf32>
    %22 = arith.subf %18, %21 : vector<2x16x8xf32>
    %23 = math.exp %22 : vector<2x16x8xf32>
    %cst_11 = arith.constant dense<0.000000e+00> : vector<2x8xf32>
    %24 = vector.multi_reduction <add>, %23, %cst_11 [1] : vector<2x16x8xf32> to vector<2x8xf32>
    %25 = vector.shape_cast %24 : vector<2x8xf32> to vector<2x1x8xf32>
    %26 = tpu.reciprocal %25 {approx = true} : vector<2x1x8xf32> -> vector<2x1x8xf32>
    %27 = vector.broadcast %26 : vector<2x1x8xf32> to vector<2x16x8xf32>
    %28 = arith.mulf %23, %27 : vector<2x16x8xf32>
    %29 = vector.shape_cast %28 : vector<2x16x8xf32> to vector<32x8xf32>
    %30 = arith.truncf %29 : vector<32x8xf32> to vector<32x8xbf16>
    %c0_12 = arith.constant 0 : index
    %c0_13 = arith.constant 0 : index
    %31 = vector.load %arg7[%c0_12, %c0_13] : memref<8x128xbf16, #tpu.memory_space<vmem>>, vector<8x128xbf16>
    %cst_14 = arith.constant dense<0.000000e+00> : vector<32x128xf32>
    %32 = tpu.matmul %30, %31, %cst_14 {dimension_numbers = #tpu.dot_dimension_numbers<[1], [0], [0], [1], [0, 0, 1, 1], [], []>} : vector<32x8xbf16>, vector<8x128xbf16>, vector<32x128xf32> -> vector<32x128xf32>
    %33 = vector.shape_cast %32 : vector<32x128xf32> to vector<2x16x128xf32>
    %34 = arith.mulf %33, %6 : vector<2x16x128xf32>
    %cst_15 = arith.constant dense<0.000000e+00> : vector<2x128xf32>
    %35 = vector.multi_reduction <add>, %34, %cst_15 [1] : vector<2x16x128xf32> to vector<2x128xf32>
    %c0_16 = arith.constant 0 : index
    %c0_17 = arith.constant 0 : index
    %36 = vector.load %arg4[%c0_16, %c0_17] : memref<128x128xf32, #tpu.memory_space<vmem>>, vector<128x128xf32>
    %cst_18 = arith.constant dense<0.000000e+00> : vector<2x128xf32>
    %37 = tpu.matmul %35, %36, %cst_18 {dimension_numbers = #tpu.dot_dimension_numbers<[1], [0], [0], [1], [0, 0, 1, 1], [], []>} : vector<2x128xf32>, vector<128x128xf32>, vector<2x128xf32> -> vector<2x128xf32>
    %c0_19 = arith.constant 0 : index
    %c0_20 = arith.constant 0 : index
    %38 = vector.load %arg5[%c0_19, %c0_20] : memref<1x128xf32, #tpu.memory_space<vmem>>, vector<1x128xf32>
    %39 = vector.broadcast %38 : vector<1x128xf32> to vector<2x128xf32>
    %40 = arith.addf %37, %39 : vector<2x128xf32>
    %c0_21 = arith.constant 0 : index
    %c0_22 = arith.constant 0 : index
    %41 = vector.load %arg8[%c0_21, %c0_22] : memref<2x128xf32, #tpu.memory_space<vmem>>, vector<2x128xf32>
    tpu.vector_store %arg8[%c0_21, %c0_22], %40 {strides = array<i32>} : memref<2x128xf32, #tpu.memory_space<vmem>>, vector<2x128xf32>,
    return
  }
  func.func @transform_0(%arg0: i32) -> (i32, i32, i32) {
    %c0_i32 = arith.constant 0 : i32
    %c0_i32_0 = arith.constant 0 : i32
    %c0_i32_1 = arith.constant 0 : i32
    return %arg0, %c0_i32, %c0_i32_0 : i32, i32, i32
  }
  func.func @transform_1(%arg0: i32) -> (i32, i32) {
    %c0_i32 = arith.constant 0 : i32
    %c0_i32_0 = arith.constant 0 : i32
    %c0_i32_1 = arith.constant 0 : i32
    return %c0_i32, %c0_i32_0 : i32, i32
  }
  func.func @transform_2(%arg0: i32) -> (i32, i32) {
    %c0_i32 = arith.constant 0 : i32
    %c0_i32_0 = arith.constant 0 : i32
    %c0_i32_1 = arith.constant 0 : i32
    return %c0_i32, %c0_i32_0 : i32, i32
  }
  func.func @transform_3(%arg0: i32) -> (i32, i32) {
    %c0_i32 = arith.constant 0 : i32
    %c0_i32_0 = arith.constant 0 : i32
    %c0_i32_1 = arith.constant 0 : i32
    return %c0_i32, %c0_i32_0 : i32, i32
  }
  func.func @transform_4(%arg0: i32) -> (i32, i32) {
    %c0_i32 = arith.constant 0 : i32
    %c0_i32_0 = arith.constant 0 : i32
    %c0_i32_1 = arith.constant 0 : i32
    return %c0_i32, %c0_i32_0 : i32, i32
  }
  func.func @transform_5(%arg0: i32) -> (i32, i32) {
    %c0_i32 = arith.constant 0 : i32
    %c0_i32_0 = arith.constant 0 : i32
    %c0_i32_1 = arith.constant 0 : i32
    return %c0_i32, %c0_i32_0 : i32, i32
  }
  func.func @transform_6(%arg0: i32) -> (i32, i32) {
    %c0_i32 = arith.constant 0 : i32
    %c0_i32_0 = arith.constant 0 : i32
    %c0_i32_1 = arith.constant 0 : i32
    return %c0_i32, %c0_i32_0 : i32, i32
  }
  func.func @transform_7(%arg0: i32) -> (i32, i32) {
    %c0_i32 = arith.constant 0 : i32
    %c0_i32_0 = arith.constant 0 : i32
    return %arg0, %c0_i32 : i32, i32
  }
}

</mosaic_0001>

<llo_original>
// kernel: tpu_custom_call.1
$region0: #{tpu_custom_call.1}
  #allocation0 [shape = 'u32[]', space=smem, size = 0x4, offset = 0x4, fixed_abs, tag = 'smem constant byte address 0x4 - core index']
  #allocation1 [shape = 'u32[144,128]{1,0:T(1,128)}', space=vmem, size = 0x12000, scoped, tag = 'internal scratch']
  %s0 = inlined_call_operand.vmem [shape: f32[2,16,128], index: 0, kind: input, shape index: {}]
  %s1 = inlined_call_operand.hbm [shape: f32[128,128], index: 1, kind: input, shape index: {}]
  %s2 = inlined_call_operand.hbm [shape: f32[128,256], index: 2, kind: input, shape index: {}]
  %s3 = inlined_call_operand.hbm [shape: f32[128,128], index: 3, kind: input, shape index: {}]
  %s4 = inlined_call_operand.vmem [shape: f32[1,128], index: 4, kind: input, shape index: {}]
  %s5 = inlined_call_operand.vmem [shape: bf16[128,8], index: 5, kind: input, shape index: {}]
  %s6 = inlined_call_operand.vmem [shape: bf16[8,128], index: 6, kind: input, shape index: {}]
  %s7 = inlined_call_operand.hbm [shape: f32[2,128], index: 7, kind: output, shape index: {}]
  %s8 = sld [smem:[#allocation0]]
  $region50: #{tpu_custom_call.1} parent=0
    _
  %s10 = ssub.s32 1, %s8
  %s11 = scalar_select 0, %s10, %s8
  $region1: #{tpu_custom_call.1} parent=0
    #allocation2 [shape = 'u8[65536]{0}', space=vmem, size = 0x10000, scoped, tag = 'input window, operand 1, single buffered']
    #allocation3 [shape = 's32[1]{0}', space=sflag, size = 0x4, scoped, tag = 'scoped memory for tpu_custom_call.1']
    #allocation4 [shape = 's32[1]{0}', space=sflag, size = 0x4, scoped, tag = 'scoped memory for tpu_custom_call.1']
    #allocation5 [shape = 'u8[131072]{0}', space=vmem, size = 0x20000, scoped, tag = 'input window, operand 2, single buffered']
    #allocation6 [shape = 's32[1]{0}', space=sflag, size = 0x4, scoped, tag = 'scoped memory for tpu_custom_call.1']
    #allocation7 [shape = 'u8[65536]{0}', space=vmem, size = 0x10000, scoped, tag = 'input window, operand 3, single buffered']
    #allocation8 [shape = 'u8[1024]{0}', space=vmem, size = 0x400, scoped, tag = 'output window, operand 0, single buffered']
    %12 = vsyncpa [#allocation3], 0
    %13 = vsyncpa [#allocation6], 0
    %14 = vsyncpa [#allocation4], 0
    // Predicated region
    $region2: #{tpu_custom_call.1} parent=1 // pred_check
      _
    $region3: #{tpu_custom_call.1} parent=1 // pred_check_branch
      %16 = sbr.rel (0) target = $region5
    $region4: #{tpu_custom_call.1} parent=1 // pred_region
      _
    $region5: #{tpu_custom_call.1} parent=1 // pred_fallthru
      _
    // Predicated region
    $region6: #{tpu_custom_call.1} parent=1 // pred_check
      _
    $region7: #{tpu_custom_call.1} parent=1 // pred_check_branch
      %18 = sbr.rel (0) target = $region9
    $region8: #{tpu_custom_call.1} parent=1 // pred_region
      %s20 = ssub.s32 2048, 2048
      %21 = vsyncadd [#allocation3], %s20
      %s22 = sshll.u32 [#allocation2], 4
      %s23 = int_to_ptr.vmem [resolvable:$true] %s22
      %28 = dma.hbm_to_vmem [thread:$0]  %s1, 2048, %s23, [#allocation3], 128, 128, 8
    $region9: #{tpu_custom_call.1} parent=1 // pred_fallthru
      _
    // Predicated region
    $region10: #{tpu_custom_call.1} parent=1 // pred_check
      _
    $region11: #{tpu_custom_call.1} parent=1 // pred_check_branch
      %30 = sbr.rel (0) target = $region13
    $region12: #{tpu_custom_call.1} parent=1 // pred_region
      %s32 = ssub.s32 4096, 4096
      %33 = vsyncadd [#allocation6], %s32
      %s34 = sshll.u32 [#allocation5], 4
      %s35 = int_to_ptr.vmem [resolvable:$true] %s34
      %40 = dma.hbm_to_vmem [thread:$0]  %s2, 4096, %s35, [#allocation6], 256, 256, 16
    $region13: #{tpu_custom_call.1} parent=1 // pred_fallthru
      _
    // Predicated region
    $region14: #{tpu_custom_call.1} parent=1 // pred_check
      _
    $region15: #{tpu_custom_call.1} parent=1 // pred_check_branch
      %42 = sbr.rel (0) target = $region17
    $region16: #{tpu_custom_call.1} parent=1 // pred_region
      %s44 = ssub.s32 2048, 2048
      %45 = vsyncadd [#allocation6], %s44
      %s46 = sshll.u32 [#allocation7], 4
      %s47 = int_to_ptr.vmem [resolvable:$true] %s46
      %52 = dma.hbm_to_vmem [thread:$0]  %s3, 2048, %s47, [#allocation6], 128, 128, 8
    $region17: #{tpu_custom_call.1} parent=1 // pred_fallthru
      _
    // Predicated region
    $region18: #{tpu_custom_call.1} parent=1 // pred_check
      _
    $region19: #{tpu_custom_call.1} parent=1 // pred_check_branch
      %54 = sbr.rel (0) target = $region21
    $region20: #{tpu_custom_call.1} parent=1 // pred_region
      _
    $region21: #{tpu_custom_call.1} parent=1 // pred_fallthru
      _
    // Predicated region
    $region22: #{tpu_custom_call.1} parent=1 // pred_check
      _
    $region23: #{tpu_custom_call.1} parent=1 // pred_check_branch
      %56 = sbr.rel (0) target = $region25
    $region24: #{tpu_custom_call.1} parent=1 // pred_region
      _
    $region25: #{tpu_custom_call.1} parent=1 // pred_fallthru
      _
    // Predicated region
    $region26: #{tpu_custom_call.1} parent=1 // pred_check
      _
    $region27: #{tpu_custom_call.1} parent=1 // pred_check_branch
      %58 = sbr.rel (0) target = $region29
    $region28: #{tpu_custom_call.1} parent=1 // pred_region
      _
    $region29: #{tpu_custom_call.1} parent=1 // pred_fallthru
      _
    // Predicated region
    $region30: #{tpu_custom_call.1} parent=1 // pred_check
      _
    $region31: #{tpu_custom_call.1} parent=1 // pred_check_branch
      %60 = sbr.rel (0) target = $region33
    $region32: #{tpu_custom_call.1} parent=1 // pred_region
      %61 = dma.done [#allocation3], 2048
    $region33: #{tpu_custom_call.1} parent=1 // pred_fallthru
      _
    // Predicated region
    $region34: #{tpu_custom_call.1} parent=1 // pred_check
      _
    $region35: #{tpu_custom_call.1} parent=1 // pred_check_branch
      %63 = sbr.rel (0) target = $region37
    $region36: #{tpu_custom_call.1} parent=1 // pred_region
      %64 = dma.done [#allocation6], 4096
    $region37: #{tpu_custom_call.1} parent=1 // pred_fallthru
      _
    // Predicated region
    $region38: #{tpu_custom_call.1} parent=1 // pred_check
      _
    $region39: #{tpu_custom_call.1} parent=1 // pred_check_branch
      %66 = sbr.rel (0) target = $region41
    $region40: #{tpu_custom_call.1} parent=1 // pred_region
      %67 = dma.done [#allocation6], 2048
    $region41: #{tpu_custom_call.1} parent=1 // pred_fallthru
      _
    %v69 = vld [vmem:[%s0] sm:$0xff]
    %v70 = vld [vmem:[%s0 + $0x8] sm:$0xff]
    %v71 = vld [vmem:[%s0 + $0x10] sm:$0xff]
    %v72 = vld [vmem:[%s0 + $0x18] sm:$0xff]
    %v73 = vld [vmem:[#allocation5] sm:$0xff]
    %v74 = vld [vmem:[#allocation5 + $0x8] sm:$0xff]
    %v75 = vld [vmem:[#allocation5 + $0x10] sm:$0xff]
    %v76 = vld [vmem:[#allocation5 + $0x18] sm:$0xff]
    %v77 = vld [vmem:[#allocation5 + $0x20] sm:$0xff]
    %v78 = vld [vmem:[#allocation5 + $0x28] sm:$0xff]
    %v79 = vld [vmem:[#allocation5 + $0x30] sm:$0xff]
    %v80 = vld [vmem:[#allocation5 + $0x38] sm:$0xff]
    %v81 = vld [vmem:[#allocation5 + $0x40] sm:$0xff]
    %v82 = vld [vmem:[#allocation5 + $0x48] sm:$0xff]
    %v83 = vld [vmem:[#allocation5 + $0x50] sm:$0xff]
    %v84 = vld [vmem:[#allocation5 + $0x58] sm:$0xff]
    %v85 = vld [vmem:[#allocation5 + $0x60] sm:$0xff]
    %v86 = vld [vmem:[#allocation5 + $0x68] sm:$0xff]
    %v87 = vld [vmem:[#allocation5 + $0x70] sm:$0xff]
    %v88 = vld [vmem:[#allocation5 + $0x78] sm:$0xff]
    %v89 = vld [vmem:[#allocation5 + $0x80] sm:$0xff]
    %v90 = vld [vmem:[#allocation5 + $0x88] sm:$0xff]
    %v91 = vld [vmem:[#allocation5 + $0x90] sm:$0xff]
    %v92 = vld [vmem:[#allocation5 + $0x98] sm:$0xff]
    %v93 = vld [vmem:[#allocation5 + $0xa0] sm:$0xff]
    %v94 = vld [vmem:[#allocation5 + $0xa8] sm:$0xff]
    %v95 = vld [vmem:[#allocation5 + $0xb0] sm:$0xff]
    %v96 = vld [vmem:[#allocation5 + $0xb8] sm:$0xff]
    %v97 = vld [vmem:[#allocation5 + $0xc0] sm:$0xff]
    %v98 = vld [vmem:[#allocation5 + $0xc8] sm:$0xff]
    %v99 = vld [vmem:[#allocation5 + $0xd0] sm:$0xff]
    %v100 = vld [vmem:[#allocation5 + $0xd8] sm:$0xff]
    %v101 = vld [vmem:[#allocation5 + $0xe0] sm:$0xff]
    %v102 = vld [vmem:[#allocation5 + $0xe8] sm:$0xff]
    %v103 = vld [vmem:[#allocation5 + $0xf0] sm:$0xff]
    %v104 = vld [vmem:[#allocation5 + $0xf8] sm:$0xff]
    %105 = vmatprep.subr.mxu0 %v74
    %106 = vmatpush1.msra.mxu0 %v73
    %107 = vmatprep.subr.mxu0 %v76
    %108 = vmatpush1.msra.mxu0 %v75
    %109 = vmatprep.subr.mxu0 %v78
    %110 = vmatpush1.msra.mxu0 %v77
    %111 = vmatprep.subr.mxu0 %v80
    %112 = vmatpush1.msra.mxu0 %v79
    %113 = vmatprep.subr.mxu0 %v82
    %114 = vmatpush1.msra.mxu0 %v81
    %115 = vmatprep.subr.mxu0 %v84
    %116 = vmatpush1.msra.mxu0 %v83
    %117 = vmatprep.subr.mxu0 %v86
    %118 = vmatpush1.msra.mxu0 %v85
    %119 = vmatprep.subr.mxu0 %v88
    %120 = vmatpush1.msra.mxu0 %v87
    %121 = vmatprep.subr.mxu0 %v90
    %122 = vmatpush1.msra.mxu0 %v89
    %123 = vmatprep.subr.mxu0 %v92
    %124 = vmatpush1.msra.mxu0 %v91
    %125 = vmatprep.subr.mxu0 %v94
    %126 = vmatpush1.msra.mxu0 %v93
    %127 = vmatprep.subr.mxu0 %v96
    %128 = vmatpush1.msra.mxu0 %v95
    %129 = vmatprep.subr.mxu0 %v98
    %130 = vmatpush1.msra.mxu0 %v97
    %131 = vmatprep.subr.mxu0 %v100
    %132 = vmatpush1.msra.mxu0 %v99
    %133 = vmatprep.subr.mxu0 %v102
    %134 = vmatpush1.msra.mxu0 %v101
    %135 = vmatprep.subr.mxu0 %v104
    %136 = vmatpush1.msra.mxu0 %v103
    %137 = vmatprep.subr.mxu0 0.0
    %138 = vmatpush1.msra.mxu0 0.0
    %139 = vmatprep.subr.mxu0 0.0
    %140 = vmatpush1.msra.mxu0 0.0
    %141 = vmatprep.subr.mxu0 0.0
    %142 = vmatpush1.msra.mxu0 0.0
    %143 = vmatprep.subr.mxu0 0.0
    %144 = vmatpush1.msra.mxu0 0.0
    %145 = vmatprep.subr.mxu0 0.0
    %146 = vmatpush1.msra.mxu0 0.0
    %147 = vmatprep.subr.mxu0 0.0
    %148 = vmatpush1.msra.mxu0 0.0
    %149 = vmatprep.subr.mxu0 0.0
    %150 = vmatpush1.msra.mxu0 0.0
    %151 = vmatprep.subr.mxu0 0.0
    %152 = vmatpush1.msra.mxu0 0.0
    %153 = vmatprep.subr.mxu0 0.0
    %154 = vmatpush1.msra.mxu0 0.0
    %155 = vmatprep.subr.mxu0 0.0
    %156 = vmatpush1.msra.mxu0 0.0
    %157 = vmatprep.subr.mxu0 0.0
    %158 = vmatpush1.msra.mxu0 0.0
    %159 = vmatprep.subr.mxu0 0.0
    %160 = vmatpush1.msra.mxu0 0.0
    %161 = vmatprep.subr.mxu0 0.0
    %162 = vmatpush1.msra.mxu0 0.0
    %163 = vmatprep.subr.mxu0 0.0
    %164 = vmatpush1.msra.mxu0 0.0
    %165 = vmatprep.subr.mxu0 0.0
    %166 = vmatpush1.msra.mxu0 0.0
    %167 = vmatprep.subr.mxu0 0.0
    %168 = vmatpush1.msra.mxu0 0.0
    %169 = vmatprep.mubr.f32.mxu0 0.0
    %170 = vmatmul.mubr.f32.gmra.mrb[0].mxu0 %v69
    %v171 = vpop.f32.mrb[0].mxu0
    %v172 = vadd.f32 0.0, %v171
    %v173 = vpop.f32.mrb[0].mxu0
    %v174 = vadd.f32 0.0, %v173
    %175 = vmatprep.mubr.f32.mxu0 0.0
    %176 = vmatmul.mubr.f32.gmra.mrb[0].mxu0 %v70
    %v177 = vpop.f32.mrb[0].mxu0
    %v178 = vadd.f32 0.0, %v177
    %v179 = vpop.f32.mrb[0].mxu0
    %v180 = vadd.f32 0.0, %v179
    %181 = vmatprep.mubr.f32.mxu0 0.0
    %182 = vmatmul.mubr.f32.gmra.mrb[0].mxu0 %v71
    %v183 = vpop.f32.mrb[0].mxu0
    %v184 = vadd.f32 0.0, %v183
    %v185 = vpop.f32.mrb[0].mxu0
    %v186 = vadd.f32 0.0, %v185
    %187 = vmatprep.mubr.f32.mxu0 0.0
    %188 = vmatmul.mubr.f32.gmra.mrb[0].mxu0 %v72
    %v189 = vpop.f32.mrb[0].mxu0
    %v190 = vadd.f32 0.0, %v189
    %v191 = vpop.f32.mrb[0].mxu0
    %v192 = vadd.f32 0.0, %v191
    %193 = vdwg.mxu0
    %v194 = vld [vmem:[#allocation2] sm:$0xff]
    %v195 = vld [vmem:[#allocation2 + $0x8] sm:$0xff]
    %v196 = vld [vmem:[#allocation2 + $0x10] sm:$0xff]
    %v197 = vld [vmem:[#allocation2 + $0x18] sm:$0xff]
    %v198 = vld [vmem:[#allocation2 + $0x20] sm:$0xff]
    %v199 = vld [vmem:[#allocation2 + $0x28] sm:$0xff]
    %v200 = vld [vmem:[#allocation2 + $0x30] sm:$0xff]
    %v201 = vld [vmem:[#allocation2 + $0x38] sm:$0xff]
    %v202 = vld [vmem:[#allocation2 + $0x40] sm:$0xff]
    %v203 = vld [vmem:[#allocation2 + $0x48] sm:$0xff]
    %v204 = vld [vmem:[#allocation2 + $0x50] sm:$0xff]
    %v205 = vld [vmem:[#allocation2 + $0x58] sm:$0xff]
    %v206 = vld [vmem:[#allocation2 + $0x60] sm:$0xff]
    %v207 = vld [vmem:[#allocation2 + $0x68] sm:$0xff]
    %v208 = vld [vmem:[#allocation2 + $0x70] sm:$0xff]
    %v209 = vld [vmem:[#allocation2 + $0x78] sm:$0xff]
    %v212 = vrot.slane %v71, 7
    %vm213 = vcmask 1041409
    %v214 = vsel %vm213, %v212, %v69
    %216 = vmatprep.subr.mxu0 0.0
    %217 = vmatpush1.msra.mxu0 %v194
    %218 = vmatprep.subr.mxu0 0.0
    %219 = vmatpush1.msra.mxu0 %v195
    %220 = vmatprep.subr.mxu0 0.0
    %221 = vmatpush1.msra.mxu0 %v196
    %222 = vmatprep.subr.mxu0 0.0
    %223 = vmatpush1.msra.mxu0 %v197
    %224 = vmatprep.subr.mxu0 0.0
    %225 = vmatpush1.msra.mxu0 %v198
    %226 = vmatprep.subr.mxu0 0.0
    %227 = vmatpush1.msra.mxu0 %v199
    %228 = vmatprep.subr.mxu0 0.0
    %229 = vmatpush1.msra.mxu0 %v200
    %230 = vmatprep.subr.mxu0 0.0
    %231 = vmatpush1.msra.mxu0 %v201
    %232 = vmatprep.subr.mxu0 0.0
    %233 = vmatpush1.msra.mxu0 %v202
    %234 = vmatprep.subr.mxu0 0.0
    %235 = vmatpush1.msra.mxu0 %v203
    %236 = vmatprep.subr.mxu0 0.0
    %237 = vmatpush1.msra.mxu0 %v204
    %238 = vmatprep.subr.mxu0 0.0
    %239 = vmatpush1.msra.mxu0 %v205
    %240 = vmatprep.subr.mxu0 0.0
    %241 = vmatpush1.msra.mxu0 %v206
    %242 = vmatprep.subr.mxu0 0.0
    %243 = vmatpush1.msra.mxu0 %v207
    %244 = vmatprep.subr.mxu0 0.0
    %245 = vmatpush1.msra.mxu0 %v208
    %246 = vmatprep.subr.mxu0 0.0
    %247 = vmatpush1.msra.mxu0 %v209
    %248 = vmatprep.subr.mxu0 0.0
    %249 = vmatpush1.msra.mxu0 0.0
    %250 = vmatprep.subr.mxu0 0.0
    %251 = vmatpush1.msra.mxu0 0.0
    %252 = vmatprep.subr.mxu0 0.0
    %253 = vmatpush1.msra.mxu0 0.0
    %254 = vmatprep.subr.mxu0 0.0
    %255 = vmatpush1.msra.mxu0 0.0
    %256 = vmatprep.subr.mxu0 0.0
    %257 = vmatpush1.msra.mxu0 0.0
    %258 = vmatprep.subr.mxu0 0.0
    %259 = vmatpush1.msra.mxu0 0.0
    %260 = vmatprep.subr.mxu0 0.0
    %261 = vmatpush1.msra.mxu0 0.0
    %262 = vmatprep.subr.mxu0 0.0
    %263 = vmatpush1.msra.mxu0 0.0
    %264 = vmatprep.subr.mxu0 0.0
    %265 = vmatpush1.msra.mxu0 0.0
    %266 = vmatprep.subr.mxu0 0.0
    %267 = vmatpush1.msra.mxu0 0.0
    %268 = vmatprep.subr.mxu0 0.0
    %269 = vmatpush1.msra.mxu0 0.0
    %270 = vmatprep.subr.mxu0 0.0
    %271 = vmatpush1.msra.mxu0 0.0
    %272 = vmatprep.subr.mxu0 0.0
    %273 = vmatpush1.msra.mxu0 0.0
    %274 = vmatprep.subr.mxu0 0.0
    %275 = vmatpush1.msra.mxu0 0.0
    %276 = vmatprep.subr.mxu0 0.0
    %277 = vmatpush1.msra.mxu0 0.0
    %278 = vmatprep.subr.mxu0 0.0
    %279 = vmatpush1.msra.mxu0 0.0
    %280 = vmatprep.mubr.f32.mxu0 0.0
    %281 = vmatmul.mubr.f32.gmra.mrb[0].mxu0 %v214
    %v282 = vpop.f32.mrb[0].mxu0
    %v283 = vadd.f32 0.0, %v282
    %v284 = vpop.f32.mrb[0].mxu0
    %285 = vdwg.mxu0
    %v288 = vunpack.c.l.s4 1966171168
    %v289 = vunpack.c.0.s8 %v288
    %v290 = vlaneseq
    %v291 = vshrl.u32 %v290, 7
    %v292 = vsub.s32 %v289, %v291
    %v293 = vrot.slane %v283, %v292
    %v294 = vcombine.high %v293, %v293
    %v296 = vunpack.c.l.s4 1966171168
    %v297 = vunpack.c.0.s8 %v296
    %v298 = vlaneseq
    %v299 = vshrl.u32 %v298, 7
    %v300 = vsub.s32 %v297, %v299
    %v301 = vrot.slane %v293, %v300
    %v303 = vunpack.c.l.s4 1966171168
    %v304 = vunpack.c.0.s8 %v303
    %v305 = vlaneseq
    %v306 = vshrl.u32 %v305, 7
    %v307 = vsub.s32 %v304, %v306
    %v308 = vrot.slane %v294, %v307
    %v309 = vlaneseq
    %v310 = vshrl.u32 %v309, 7
    %v311 = vsub.s32 0, %v310
    %v312 = vrot.slane %v301, %v311
    %v313 = vlaneseq
    %v314 = vshrl.u32 %v313, 7
    %v315 = vsub.s32 0, %v314
    %v316 = vrot.slane %v308, %v315
    %v319 = vmul.f32 %v172, %v312
    %v320 = vmul.f32 %v178, %v312
    %v321 = vmul.f32 %v184, %v316
    %v322 = vmul.f32 %v190, %v316
    %v323 = vpack.c.bf16 %v320, %v319
    %v324 = vpack.c.bf16 %v322, %v321
    %v325 = vld [vmem:[%s5] sm:$0xf]
    %v326 = vld [vmem:[%s5 + $0x4] sm:$0xf]
    %v327 = vld [vmem:[%s5 + $0x8] sm:$0xf]
    %v328 = vld [vmem:[%s5 + $0xc] sm:$0xf]
    %v329 = vld [vmem:[%s5 + $0x10] sm:$0xf]
    %v330 = vld [vmem:[%s5 + $0x14] sm:$0xf]
    %v331 = vld [vmem:[%s5 + $0x18] sm:$0xf]
    %v332 = vld [vmem:[%s5 + $0x1c] sm:$0xf]
    %v333 = vld [vmem:[%s5 + $0x20] sm:$0xf]
    %v334 = vld [vmem:[%s5 + $0x24] sm:$0xf]
    %v335 = vld [vmem:[%s5 + $0x28] sm:$0xf]
    %v336 = vld [vmem:[%s5 + $0x2c] sm:$0xf]
    %v337 = vld [vmem:[%s5 + $0x30] sm:$0xf]
    %v338 = vld [vmem:[%s5 + $0x34] sm:$0xf]
    %v339 = vld [vmem:[%s5 + $0x38] sm:$0xf]
    %v340 = vld [vmem:[%s5 + $0x3c] sm:$0xf]
    %v357 = vunpack.c.l.b16 %v325
    %v358 = vunpack.c.l.b16 %v326
    %v359 = vunpack.c.l.b16 %v327
    %v360 = vunpack.c.l.b16 %v328
    %v361 = vunpack.c.l.b16 %v329
    %v362 = vunpack.c.l.b16 %v330
    %v363 = vunpack.c.l.b16 %v331
    %v364 = vunpack.c.l.b16 %v332
    %v365 = vunpack.c.l.b16 %v333
    %v366 = vunpack.c.l.b16 %v334
    %v367 = vunpack.c.l.b16 %v335
    %v368 = vunpack.c.l.b16 %v336
    %v369 = vunpack.c.l.b16 %v337
    %v370 = vunpack.c.l.b16 %v338
    %v371 = vunpack.c.l.b16 %v339
    %v372 = vunpack.c.l.b16 %v340
    %v373 = vpack.c.b16 %v358, %v357
    %v374 = vpack.c.b16 %v360, %v359
    %v375 = vpack.c.b16 %v362, %v361
    %v376 = vpack.c.b16 %v364, %v363
    %v377 = vpack.c.b16 %v366, %v365
    %v378 = vpack.c.b16 %v368, %v367
    %v379 = vpack.c.b16 %v370, %v369
    %v380 = vpack.c.b16 %v372, %v371
    %389 = vmatprep.subr.bf16.mxu0 0
    %390 = vmatpush1.bf16.msra.mxu0 %v373
    %391 = vmatprep.subr.bf16.mxu0 0
    %392 = vmatpush1.bf16.msra.mxu0 %v374
    %393 = vmatprep.subr.bf16.mxu0 0
    %394 = vmatpush1.bf16.msra.mxu0 %v375
    %395 = vmatprep.subr.bf16.mxu0 0
    %396 = vmatpush1.bf16.msra.mxu0 %v376
    %397 = vmatprep.subr.bf16.mxu0 0
    %398 = vmatpush1.bf16.msra.mxu0 %v377
    %399 = vmatprep.subr.bf16.mxu0 0
    %400 = vmatpush1.bf16.msra.mxu0 %v378
    %401 = vmatprep.subr.bf16.mxu0 0
    %402 = vmatpush1.bf16.msra.mxu0 %v379
    %403 = vmatprep.subr.bf16.mxu0 0
    %404 = vmatpush1.bf16.msra.mxu0 %v380
    %405 = vmatprep.subr.bf16.mxu0 0
    %406 = vmatpush1.bf16.msra.mxu0 0
    %407 = vmatprep.subr.bf16.mxu0 0
    %408 = vmatpush1.bf16.msra.mxu0 0
    %409 = vmatprep.subr.bf16.mxu0 0
    %410 = vmatpush1.bf16.msra.mxu0 0
    %411 = vmatprep.subr.bf16.mxu0 0
    %412 = vmatpush1.bf16.msra.mxu0 0
    %413 = vmatprep.subr.bf16.mxu0 0
    %414 = vmatpush1.bf16.msra.mxu0 0
    %415 = vmatprep.subr.bf16.mxu0 0
    %416 = vmatpush1.bf16.msra.mxu0 0
    %417 = vmatprep.subr.bf16.mxu0 0
    %418 = vmatpush1.bf16.msra.mxu0 0
    %419 = vmatprep.subr.bf16.mxu0 0
    %420 = vmatpush1.bf16.msra.mxu0 0
    %421 = vmatprep.mubr.bf16.mxu0 0
    %422 = vmatmul.mubr.bf16.gmra.mrb[0].mxu0 %v323
    %v423 = vpop.f32.mrb[0].mxu0
    %v424 = vadd.f32 0.0, %v423
    %v425 = vpop.f32.mrb[0].mxu0
    %v426 = vpop.f32.mrb[0].mxu0
    %v427 = vadd.f32 0.0, %v426
    %v428 = vpop.f32.mrb[0].mxu0
    %429 = vmatprep.mubr.bf16.mxu0 0
    %430 = vmatmul.mubr.bf16.gmra.mrb[0].mxu0 %v324
    %v431 = vpop.f32.mrb[0].mxu0
    %v432 = vadd.f32 0.0, %v431
    %v433 = vpop.f32.mrb[0].mxu0
    %v434 = vpop.f32.mrb[0].mxu0
    %v435 = vadd.f32 0.0, %v434
    %v436 = vpop.f32.mrb[0].mxu0
    %437 = vdwg.mxu0
    %vm438 = vcmask 64512
    %v439 = vsel %vm438, %v424, -inf
    %v440 = vsel %vm438, %v427, -inf
    %v441 = vmax.f32 %v439, %v440
    %v442 = vrot.slane %v441, 4
    %v443 = vmax.f32 %v441, %v442
    %v444 = vrot.slane %v443, 2
    %v445 = vmax.f32 %v443, %v444
    %v446 = vrot.slane %v445, 1
    %v447 = vmax.f32 %v445, %v446
    %v448 = vsel %vm438, %v432, -inf
    %v449 = vsel %vm438, %v435, -inf
    %v450 = vmax.f32 %v448, %v449
    %v451 = vrot.slane %v450, 4
    %v452 = vmax.f32 %v450, %v451
    %v453 = vrot.slane %v452, 2
    %v454 = vmax.f32 %v452, %v453
    %v455 = vrot.slane %v454, 1
    %v456 = vmax.f32 %v454, %v455
    %v457 = vsub.f32 %v424, %v447
    %v458 = vsub.f32 %v427, %v447
    %v459 = vsub.f32 %v432, %v456
    %v460 = vsub.f32 %v435, %v456
    %v461 = vmul.f32 %v457, 1.442695
    %v462 = vpow.pop %v461
    %v463 = vmul.f32 %v458, 1.442695
    %v464 = vpow.pop %v463
    %v465 = vmul.f32 %v459, 1.442695
    %v466 = vpow.pop %v465
    %v467 = vmul.f32 %v460, 1.442695
    %v468 = vpow.pop %v467
    %v469 = vsel %vm438, %v462, 0.0
    %v470 = vsel %vm438, %v464, 0.0
    %v471 = vadd.f32 %v469, %v470
    %v472 = vrot.slane %v471, 4
    %v473 = vadd.f32 %v471, %v472
    %v474 = vrot.slane %v473, 2
    %v475 = vadd.f32 %v473, %v474
    %v476 = vrot.slane %v475, 1
    %v477 = vadd.f32 %v475, %v476
    %v478 = vsel %vm438, %v466, 0.0
    %v479 = vsel %vm438, %v468, 0.0
    %v480 = vadd.f32 %v478, %v479
    %v481 = vrot.slane %v480, 4
    %v482 = vadd.f32 %v480, %v481
    %v483 = vrot.slane %v482, 2
    %v484 = vadd.f32 %v482, %v483
    %v485 = vrot.slane %v484, 1
    %v486 = vadd.f32 %v484, %v485
    %v487 = vrcp.pop %v477
    %v488 = vrcp.pop %v486
    %v489 = vmul.f32 %v462, %v487
    %v490 = vmul.f32 %v464, %v487
    %v491 = vmul.f32 %v466, %v488
    %v492 = vmul.f32 %v468, %v488
    %v493 = vpack.c.bf16 %v490, %v489
    %v494 = vpack.c.bf16 %v492, %v491
    %v495 = vld [vmem:[%s6] sm:$0xf]
    %v497 = vsel %vm438, %v493, 0
    %v500 = vsel %vm438, %v494, 0
    %vm502 = vcmask 1043456
    %v504 = vsel %vm502, %v495, 0
    %506 = vmatprep.subr.bf16.mxu0 0
    %507 = vmatpush1.bf16.msra.mxu0 %v504
    %508 = vmatprep.subr.bf16.mxu0 0
    %509 = vmatpush1.bf16.msra.mxu0 0
    %510 = vmatprep.subr.bf16.mxu0 0
    %511 = vmatpush1.bf16.msra.mxu0 0
    %512 = vmatprep.subr.bf16.mxu0 0
    %513 = vmatpush1.bf16.msra.mxu0 0
    %514 = vmatprep.subr.bf16.mxu0 0
    %515 = vmatpush1.bf16.msra.mxu0 0
    %516 = vmatprep.subr.bf16.mxu0 0
    %517 = vmatpush1.bf16.msra.mxu0 0
    %518 = vmatprep.subr.bf16.mxu0 0
    %519 = vmatpush1.bf16.msra.mxu0 0
    %520 = vmatprep.subr.bf16.mxu0 0
    %521 = vmatpush1.bf16.msra.mxu0 0
    %522 = vmatprep.subr.bf16.mxu0 0
    %523 = vmatpush1.bf16.msra.mxu0 0
    %524 = vmatprep.subr.bf16.mxu0 0
    %525 = vmatpush1.bf16.msra.mxu0 0
    %526 = vmatprep.subr.bf16.mxu0 0
    %527 = vmatpush1.bf16.msra.mxu0 0
    %528 = vmatprep.subr.bf16.mxu0 0
    %529 = vmatpush1.bf16.msra.mxu0 0
    %530 = vmatprep.subr.bf16.mxu0 0
    %531 = vmatpush1.bf16.msra.mxu0 0
    %532 = vmatprep.subr.bf16.mxu0 0
    %533 = vmatpush1.bf16.msra.mxu0 0
    %534 = vmatprep.subr.bf16.mxu0 0
    %535 = vmatpush1.bf16.msra.mxu0 0
    %536 = vmatprep.subr.bf16.mxu0 0
    %537 = vmatpush1.bf16.msra.mxu0 0
    %538 = vmatprep.mubr.bf16.mxu0 0
    %539 = vmatmul.mubr.bf16.gmra.mrb[0].mxu0 %v497
    %v540 = vpop.f32.mrb[0].mxu0
    %v541 = vadd.f32 0.0, %v540
    %v542 = vpop.f32.mrb[0].mxu0
    %v543 = vpop.f32.mrb[0].mxu0
    %v544 = vadd.f32 0.0, %v543
    %v545 = vpop.f32.mrb[0].mxu0
    %546 = vmatprep.mubr.bf16.mxu0 0
    %547 = vmatmul.mubr.bf16.gmra.mrb[0].mxu0 %v500
    %v548 = vpop.f32.mrb[0].mxu0
    %v549 = vadd.f32 0.0, %v548
    %v550 = vpop.f32.mrb[0].mxu0
    %v551 = vpop.f32.mrb[0].mxu0
    %v552 = vadd.f32 0.0, %v551
    %v553 = vpop.f32.mrb[0].mxu0
    %554 = vdwg.mxu0
    %v555 = vmul.f32 %v541, %v174
    %v556 = vmul.f32 %v544, %v180
    %v557 = vmul.f32 %v549, %v186
    %v558 = vmul.f32 %v552, %v192
    %v559 = vadd.f32 %v555, %v556
    %v560 = vrot.slane %v559, 4
    %v561 = vadd.f32 %v559, %v560
    %v562 = vrot.slane %v561, 2
    %v563 = vadd.f32 %v561, %v562
    %v564 = vrot.slane %v563, 1
    %v565 = vadd.f32 %v563, %v564
    %v566 = vadd.f32 %v557, %v558
    %v567 = vrot.slane %v566, 4
    %v568 = vadd.f32 %v566, %v567
    %v569 = vrot.slane %v568, 2
    %v570 = vadd.f32 %v568, %v569
    %v571 = vrot.slane %v570, 1
    %v572 = vadd.f32 %v570, %v571
    %v573 = vld [vmem:[#allocation7] sm:$0xff]
    %v574 = vld [vmem:[#allocation7 + $0x8] sm:$0xff]
    %v575 = vld [vmem:[#allocation7 + $0x10] sm:$0xff]
    %v576 = vld [vmem:[#allocation7 + $0x18] sm:$0xff]
    %v577 = vld [vmem:[#allocation7 + $0x20] sm:$0xff]
    %v578 = vld [vmem:[#allocation7 + $0x28] sm:$0xff]
    %v579 = vld [vmem:[#allocation7 + $0x30] sm:$0xff]
    %v580 = vld [vmem:[#allocation7 + $0x38] sm:$0xff]
    %v581 = vld [vmem:[#allocation7 + $0x40] sm:$0xff]
    %v582 = vld [vmem:[#allocation7 + $0x48] sm:$0xff]
    %v583 = vld [vmem:[#allocation7 + $0x50] sm:$0xff]
    %v584 = vld [vmem:[#allocation7 + $0x58] sm:$0xff]
    %v585 = vld [vmem:[#allocation7 + $0x60] sm:$0xff]
    %v586 = vld [vmem:[#allocation7 + $0x68] sm:$0xff]
    %v587 = vld [vmem:[#allocation7 + $0x70] sm:$0xff]
    %v588 = vld [vmem:[#allocation7 + $0x78] sm:$0xff]
    %v589 = vld [vmem:[%s4] sm:$0x1]
    %v591 = vlaneseq
    %v592 = vshrl.u32 %v591, 7
    %v593 = vsub.s32 0, %v592
    %v594 = vrot.slane %v589, %v593
    %v598 = vsel %vm213, %v572, %v565
    %600 = vmatprep.subr.mxu0 0.0
    %601 = vmatpush1.msra.mxu0 %v573
    %602 = vmatprep.subr.mxu0 0.0
    %603 = vmatpush1.msra.mxu0 %v574
    %604 = vmatprep.subr.mxu0 0.0
    %605 = vmatpush1.msra.mxu0 %v575
    %606 = vmatprep.subr.mxu0 0.0
    %607 = vmatpush1.msra.mxu0 %v576
    %608 = vmatprep.subr.mxu0 0.0
    %609 = vmatpush1.msra.mxu0 %v577
    %610 = vmatprep.subr.mxu0 0.0
    %611 = vmatpush1.msra.mxu0 %v578
    %612 = vmatprep.subr.mxu0 0.0
    %613 = vmatpush1.msra.mxu0 %v579
    %614 = vmatprep.subr.mxu0 0.0
    %615 = vmatpush1.msra.mxu0 %v580
    %616 = vmatprep.subr.mxu0 0.0
    %617 = vmatpush1.msra.mxu0 %v581
    %618 = vmatprep.subr.mxu0 0.0
    %619 = vmatpush1.msra.mxu0 %v582
    %620 = vmatprep.subr.mxu0 0.0
    %621 = vmatpush1.msra.mxu0 %v583
    %622 = vmatprep.subr.mxu0 0.0
    %623 = vmatpush1.msra.mxu0 %v584
    %624 = vmatprep.subr.mxu0 0.0
    %625 = vmatpush1.msra.mxu0 %v585
    %626 = vmatprep.subr.mxu0 0.0
    %627 = vmatpush1.msra.mxu0 %v586
    %628 = vmatprep.subr.mxu0 0.0
    %629 = vmatpush1.msra.mxu0 %v587
    %630 = vmatprep.subr.mxu0 0.0
    %631 = vmatpush1.msra.mxu0 %v588
    %632 = vmatprep.subr.mxu0 0.0
    %633 = vmatpush1.msra.mxu0 0.0
    %634 = vmatprep.subr.mxu0 0.0
    %635 = vmatpush1.msra.mxu0 0.0
    %636 = vmatprep.subr.mxu0 0.0
    %637 = vmatpush1.msra.mxu0 0.0
    %638 = vmatprep.subr.mxu0 0.0
    %639 = vmatpush1.msra.mxu0 0.0
    %640 = vmatprep.subr.mxu0 0.0
    %641 = vmatpush1.msra.mxu0 0.0
    %642 = vmatprep.subr.mxu0 0.0
    %643 = vmatpush1.msra.mxu0 0.0
    %644 = vmatprep.subr.mxu0 0.0
    %645 = vmatpush1.msra.mxu0 0.0
    %646 = vmatprep.subr.mxu0 0.0
    %647 = vmatpush1.msra.mxu0 0.0
    %648 = vmatprep.subr.mxu0 0.0
    %649 = vmatpush1.msra.mxu0 0.0
    %650 = vmatprep.subr.mxu0 0.0
    %651 = vmatpush1.msra.mxu0 0.0
    %652 = vmatprep.subr.mxu0 0.0
    %653 = vmatpush1.msra.mxu0 0.0
    %654 = vmatprep.subr.mxu0 0.0
    %655 = vmatpush1.msra.mxu0 0.0
    %656 = vmatprep.subr.mxu0 0.0
    %657 = vmatpush1.msra.mxu0 0.0
    %658 = vmatprep.subr.mxu0 0.0
    %659 = vmatpush1.msra.mxu0 0.0
    %660 = vmatprep.subr.mxu0 0.0
    %661 = vmatpush1.msra.mxu0 0.0
    %662 = vmatprep.subr.mxu0 0.0
    %663 = vmatpush1.msra.mxu0 0.0
    %664 = vmatprep.mubr.f32.mxu0 0.0
    %665 = vmatmul.mubr.f32.gmra.mrb[0].mxu0 %v598
    %v666 = vpop.f32.mrb[0].mxu0
    %v667 = vadd.f32 %v594, %v666
    %v668 = vpop.f32.mrb[0].mxu0
    %669 = vdwg.mxu0
    %670 = vst [vmem:[#allocation8] sm:$0x3] %v667
    // Predicated region
    $region42: #{tpu_custom_call.1} parent=1 // pred_check
      _
    $region43: #{tpu_custom_call.1} parent=1 // pred_check_branch
      %672 = sbr.rel (0) target = $region45
    $region44: #{tpu_custom_call.1} parent=1 // pred_region
      %s674 = ssub.s32 32, 32
      %675 = vsyncadd [#allocation4], %s674
      %s677 = sshll.u32 [#allocation8], 4
      %s678 = int_to_ptr.vmem [resolvable:$true] %s677
      %680 = dma.vmem_to_hbm [thread:$0]  %s678, 32, %s7, [#allocation4]
    $region45: #{tpu_custom_call.1} parent=1 // pred_fallthru
      _
    // Predicated region
    $region46: #{tpu_custom_call.1} parent=1 // pred_check
      _
    $region47: #{tpu_custom_call.1} parent=1 // pred_check_branch
      %682 = sbr.rel (0) target = $region49
    $region48: #{tpu_custom_call.1} parent=1 // pred_region
      %683 = dma.done [#allocation4], 32
    $region49: #{tpu_custom_call.1} parent=1 // pred_fallthru
      _
    %684 = vsyncpa [#allocation3], 1
    %685 = vsyncpa [#allocation6], 1
    %686 = vsyncpa [#allocation4], 1

// kernel: tpu_custom_call.1
$region0: #{tpu_custom_call.1}
  #allocation0 [shape = 'u32[]', space=smem, size = 0x4, offset = 0x4, fixed_abs, tag = 'smem constant byte address 0x4 - core index']
  #allocation1 [shape = 'u32[144,128]{1,0:T(1,128)}', space=vmem, size = 0x12000, scoped, tag = 'internal scratch']
  %s0 = inlined_call_operand.vmem [shape: f32[2,16,128], index: 0, kind: input, shape index: {}]
  %s1 = inlined_call_operand.hbm [shape: f32[128,128], index: 1, kind: input, shape index: {}]
  %s2 = inlined_call_operand.hbm [shape: f32[128,256], index: 2, kind: input, shape index: {}]
  %s3 = inlined_call_operand.hbm [shape: f32[128,128], index: 3, kind: input, shape index: {}]
  %s4 = inlined_call_operand.vmem [shape: f32[1,128], index: 4, kind: input, shape index: {}]
  %s5 = inlined_call_operand.vmem [shape: bf16[128,8], index: 5, kind: input, shape index: {}]
  %s6 = inlined_call_operand.vmem [shape: bf16[8,128], index: 6, kind: input, shape index: {}]
  %s7 = inlined_call_operand.hbm [shape: f32[2,128], index: 7, kind: output, shape index: {}]
  %s8 = sld [smem:[#allocation0]]
  $region50: #{tpu_custom_call.1} parent=0
    _
  %s10 = ssub.s32 1, %s8
  %s11 = scalar_select 0, %s10, %s8
  $region1: #{tpu_custom_call.1} parent=0
    #allocation2 [shape = 'u8[65536]{0}', space=vmem, size = 0x10000, scoped, tag = 'input window, operand 1, single buffered']
    #allocation3 [shape = 's32[1]{0}', space=sflag, size = 0x4, scoped, tag = 'scoped memory for tpu_custom_call.1']
    #allocation4 [shape = 's32[1]{0}', space=sflag, size = 0x4, scoped, tag = 'scoped memory for tpu_custom_call.1']
    #allocation5 [shape = 'u8[131072]{0}', space=vmem, size = 0x20000, scoped, tag = 'input window, operand 2, single buffered']
    #allocation6 [shape = 's32[1]{0}', space=sflag, size = 0x4, scoped, tag = 'scoped memory for tpu_custom_call.1']
    #allocation7 [shape = 'u8[65536]{0}', space=vmem, size = 0x10000, scoped, tag = 'input window, operand 3, single buffered']
    #allocation8 [shape = 'u8[1024]{0}', space=vmem, size = 0x400, scoped, tag = 'output window, operand 0, single buffered']
    %12 = vsyncpa [#allocation3], 0
    %13 = vsyncpa [#allocation6], 0
    %14 = vsyncpa [#allocation4], 0
    // Predicated region
    $region2: #{tpu_custom_call.1} parent=1 // pred_check
      _
    $region3: #{tpu_custom_call.1} parent=1 // pred_check_branch
      %16 = sbr.rel (0) target = $region5
    $region4: #{tpu_custom_call.1} parent=1 // pred_region
      _
    $region5: #{tpu_custom_call.1} parent=1 // pred_fallthru
      _
    // Predicated region
    $region6: #{tpu_custom_call.1} parent=1 // pred_check
      _
    $region7: #{tpu_custom_call.1} parent=1 // pred_check_branch
      %18 = sbr.rel (0) target = $region9
    $region8: #{tpu_custom_call.1} parent=1 // pred_region
      %s20 = ssub.s32 2048, 2048
      %21 = vsyncadd [#allocation3], %s20
      %s22 = sshll.u32 [#allocation2], 4
      %s23 = int_to_ptr.vmem [resolvable:$true] %s22
      %28 = dma.hbm_to_vmem [thread:$0]  %s1, 2048, %s23, [#allocation3], 128, 128, 8
    $region9: #{tpu_custom_call.1} parent=1 // pred_fallthru
      _
    // Predicated region
    $region10: #{tpu_custom_call.1} parent=1 // pred_check
      _
    $region11: #{tpu_custom_call.1} parent=1 // pred_check_branch
      %30 = sbr.rel (0) target = $region13
    $region12: #{tpu_custom_call.1} parent=1 // pred_region
      %s32 = ssub.s32 4096, 4096
      %33 = vsyncadd [#allocation6], %s32
      %s34 = sshll.u32 [#allocation5], 4
      %s35 = int_to_ptr.vmem [resolvable:$true] %s34
      %40 = dma.hbm_to_vmem [thread:$0]  %s2, 4096, %s35, [#allocation6], 256, 256, 16
    $region13: #{tpu_custom_call.1} parent=1 // pred_fallthru
      _
    // Predicated region
    $region14: #{tpu_custom_call.1} parent=1 // pred_check
      _
    $region15: #{tpu_custom_call.1} parent=1 // pred_check_branch
      %42 = sbr.rel (0) target = $region17
    $region16: #{tpu_custom_call.1} parent=1 // pred_region
      %s44 = ssub.s32 2048, 2048
      %45 = vsyncadd [#allocation6], %s44
      %s46 = sshll.u32 [#allocation7], 4
      %s47 = int_to_ptr.vmem [resolvable:$true] %s46
      %52 = dma.hbm_to_vmem [thread:$0]  %s3, 2048, %s47, [#allocation6], 128, 128, 8
    $region17: #{tpu_custom_call.1} parent=1 // pred_fallthru
      _
    // Predicated region
    $region18: #{tpu_custom_call.1} parent=1 // pred_check
      _
    $region19: #{tpu_custom_call.1} parent=1 // pred_check_branch
      %54 = sbr.rel (0) target = $region21
    $region20: #{tpu_custom_call.1} parent=1 // pred_region
      _
    $region21: #{tpu_custom_call.1} parent=1 // pred_fallthru
      _
    // Predicated region
    $region22: #{tpu_custom_call.1} parent=1 // pred_check
      _
    $region23: #{tpu_custom_call.1} parent=1 // pred_check_branch
      %56 = sbr.rel (0) target = $region25
    $region24: #{tpu_custom_call.1} parent=1 // pred_region
      _
    $region25: #{tpu_custom_call.1} parent=1 // pred_fallthru
      _
    // Predicated region
    $region26: #{tpu_custom_call.1} parent=1 // pred_check
      _
    $region27: #{tpu_custom_call.1} parent=1 // pred_check_branch
      %58 = sbr.rel (0) target = $region29
    $region28: #{tpu_custom_call.1} parent=1 // pred_region
      _
    $region29: #{tpu_custom_call.1} parent=1 // pred_fallthru
      _
    // Predicated region
    $region30: #{tpu_custom_call.1} parent=1 // pred_check
      _
    $region31: #{tpu_custom_call.1} parent=1 // pred_check_branch
      %60 = sbr.rel (0) target = $region33
    $region32: #{tpu_custom_call.1} parent=1 // pred_region
      %61 = dma.done [#allocation3], 2048
    $region33: #{tpu_custom_call.1} parent=1 // pred_fallthru
      _
    // Predicated region
    $region34: #{tpu_custom_call.1} parent=1 // pred_check
      _
    $region35: #{tpu_custom_call.1} parent=1 // pred_check_branch
      %63 = sbr.rel (0) target = $region37
    $region36: #{tpu_custom_call.1} parent=1 // pred_region
      %64 = dma.done [#allocation6], 4096
    $region37: #{tpu_custom_call.1} parent=1 // pred_fallthru
      _
    // Predicated region
    $region38: #{tpu_custom_call.1} parent=1 // pred_check
      _
    $region39: #{tpu_custom_call.1} parent=1 // pred_check_branch
      %66 = sbr.rel (0) target = $region41
    $region40: #{tpu_custom_call.1} parent=1 // pred_region
      %67 = dma.done [#allocation6], 2048
    $region41: #{tpu_custom_call.1} parent=1 // pred_fallthru
      _
    %v69 = vld [vmem:[%s0] sm:$0xff]
    %v70 = vld [vmem:[%s0 + $0x8] sm:$0xff]
    %v71 = vld [vmem:[%s0 + $0x10] sm:$0xff]
    %v72 = vld [vmem:[%s0 + $0x18] sm:$0xff]
    %v73 = vld [vmem:[#allocation5] sm:$0xff]
    %v74 = vld [vmem:[#allocation5 + $0x8] sm:$0xff]
    %v75 = vld [vmem:[#allocation5 + $0x10] sm:$0xff]
    %v76 = vld [vmem:[#allocation5 + $0x18] sm:$0xff]
    %v77 = vld [vmem:[#allocation5 + $0x20] sm:$0xff]
    %v78 = vld [vmem:[#allocation5 + $0x28] sm:$0xff]
    %v79 = vld [vmem:[#allocation5 + $0x30] sm:$0xff]
    %v80 = vld [vmem:[#allocation5 + $0x38] sm:$0xff]
    %v81 = vld [vmem:[#allocation5 + $0x40] sm:$0xff]
    %v82 = vld [vmem:[#allocation5 + $0x48] sm:$0xff]
    %v83 = vld [vmem:[#allocation5 + $0x50] sm:$0xff]
    %v84 = vld [vmem:[#allocation5 + $0x58] sm:$0xff]
    %v85 = vld [vmem:[#allocation5 + $0x60] sm:$0xff]
    %v86 = vld [vmem:[#allocation5 + $0x68] sm:$0xff]
    %v87 = vld [vmem:[#allocation5 + $0x70] sm:$0xff]
    %v88 = vld [vmem:[#allocation5 + $0x78] sm:$0xff]
    %v89 = vld [vmem:[#allocation5 + $0x80] sm:$0xff]
    %v90 = vld [vmem:[#allocation5 + $0x88] sm:$0xff]
    %v91 = vld [vmem:[#allocation5 + $0x90] sm:$0xff]
    %v92 = vld [vmem:[#allocation5 + $0x98] sm:$0xff]
    %v93 = vld [vmem:[#allocation5 + $0xa0] sm:$0xff]
    %v94 = vld [vmem:[#allocation5 + $0xa8] sm:$0xff]
    %v95 = vld [vmem:[#allocation5 + $0xb0] sm:$0xff]
    %v96 = vld [vmem:[#allocation5 + $0xb8] sm:$0xff]
    %v97 = vld [vmem:[#allocation5 + $0xc0] sm:$0xff]
    %v98 = vld [vmem:[#allocation5 + $0xc8] sm:$0xff]
    %v99 = vld [vmem:[#allocation5 + $0xd0] sm:$0xff]
    %v100 = vld [vmem:[#allocation5 + $0xd8] sm:$0xff]
    %v101 = vld [vmem:[#allocation5 + $0xe0] sm:$0xff]
    %v102 = vld [vmem:[#allocation5 + $0xe8] sm:$0xff]
    %v103 = vld [vmem:[#allocation5 + $0xf0] sm:$0xff]
    %v104 = vld [vmem:[#allocation5 + $0xf8] sm:$0xff]
    %105 = vmatprep.subr.mxu0 %v74
    %106 = vmatpush1.msra.mxu0 %v73
    %107 = vmatprep.subr.mxu0 %v76
    %108 = vmatpush1.msra.mxu0 %v75
    %109 = vmatprep.subr.mxu0 %v78
    %110 = vmatpush1.msra.mxu0 %v77
    %111 = vmatprep.subr.mxu0 %v80
    %112 = vmatpush1.msra.mxu0 %v79
    %113 = vmatprep.subr.mxu0 %v82
    %114 = vmatpush1.msra.mxu0 %v81
    %115 = vmatprep.subr.mxu0 %v84
    %116 = vmatpush1.msra.mxu0 %v83
    %117 = vmatprep.subr.mxu0 %v86
    %118 = vmatpush1.msra.mxu0 %v85
    %119 = vmatprep.subr.mxu0 %v88
    %120 = vmatpush1.msra.mxu0 %v87
    %121 = vmatprep.subr.mxu0 %v90
    %122 = vmatpush1.msra.mxu0 %v89
    %123 = vmatprep.subr.mxu0 %v92
    %124 = vmatpush1.msra.mxu0 %v91
    %125 = vmatprep.subr.mxu0 %v94
    %126 = vmatpush1.msra.mxu0 %v93
    %127 = vmatprep.subr.mxu0 %v96
    %128 = vmatpush1.msra.mxu0 %v95
    %129 = vmatprep.subr.mxu0 %v98
    %130 = vmatpush1.msra.mxu0 %v97
    %131 = vmatprep.subr.mxu0 %v100
    %132 = vmatpush1.msra.mxu0 %v99
    %133 = vmatprep.subr.mxu0 %v102
    %134 = vmatpush1.msra.mxu0 %v101
    %135 = vmatprep.subr.mxu0 %v104
    %136 = vmatpush1.msra.mxu0 %v103
    %137 = vmatprep.subr.mxu0 0.0
    %138 = vmatpush1.msra.mxu0 0.0
    %139 = vmatprep.subr.mxu0 0.0
    %140 = vmatpush1.msra.mxu0 0.0
    %141 = vmatprep.subr.mxu0 0.0
    %142 = vmatpush1.msra.mxu0 0.0
    %143 = vmatprep.subr.mxu0 0.0
    %144 = vmatpush1.msra.mxu0 0.0
    %145 = vmatprep.subr.mxu0 0.0
    %146 = vmatpush1.msra.mxu0 0.0
    %147 = vmatprep.subr.mxu0 0.0
    %148 = vmatpush1.msra.mxu0 0.0
    %149 = vmatprep.subr.mxu0 0.0
    %150 = vmatpush1.msra.mxu0 0.0
    %151 = vmatprep.subr.mxu0 0.0
    %152 = vmatpush1.msra.mxu0 0.0
    %153 = vmatprep.subr.mxu0 0.0
    %154 = vmatpush1.msra.mxu0 0.0
    %155 = vmatprep.subr.mxu0 0.0
    %156 = vmatpush1.msra.mxu0 0.0
    %157 = vmatprep.subr.mxu0 0.0
    %158 = vmatpush1.msra.mxu0 0.0
    %159 = vmatprep.subr.mxu0 0.0
    %160 = vmatpush1.msra.mxu0 0.0
    %161 = vmatprep.subr.mxu0 0.0
    %162 = vmatpush1.msra.mxu0 0.0
    %163 = vmatprep.subr.mxu0 0.0
    %164 = vmatpush1.msra.mxu0 0.0
    %165 = vmatprep.subr.mxu0 0.0
    %166 = vmatpush1.msra.mxu0 0.0
    %167 = vmatprep.subr.mxu0 0.0
    %168 = vmatpush1.msra.mxu0 0.0
    %169 = vmatprep.mubr.f32.mxu0 0.0
    %170 = vmatmul.mubr.f32.gmra.mrb[0].mxu0 %v69
    %v171 = vpop.f32.mrb[0].mxu0
    %v172 = vadd.f32 0.0, %v171
    %v173 = vpop.f32.mrb[0].mxu0
    %v174 = vadd.f32 0.0, %v173
    %175 = vmatprep.mubr.f32.mxu0 0.0
    %176 = vmatmul.mubr.f32.gmra.mrb[0].mxu0 %v70
    %v177 = vpop.f32.mrb[0].mxu0
    %v178 = vadd.f32 0.0, %v177
    %v179 = vpop.f32.mrb[0].mxu0
    %v180 = vadd.f32 0.0, %v179
    %181 = vmatprep.mubr.f32.mxu0 0.0
    %182 = vmatmul.mubr.f32.gmra.mrb[0].mxu0 %v71
    %v183 = vpop.f32.mrb[0].mxu0
    %v184 = vadd.f32 0.0, %v183
    %v185 = vpop.f32.mrb[0].mxu0
    %v186 = vadd.f32 0.0, %v185
    %187 = vmatprep.mubr.f32.mxu0 0.0
    %188 = vmatmul.mubr.f32.gmra.mrb[0].mxu0 %v72
    %v189 = vpop.f32.mrb[0].mxu0
    %v190 = vadd.f32 0.0, %v189
    %v191 = vpop.f32.mrb[0].mxu0
    %v192 = vadd.f32 0.0, %v191
    %193 = vdwg.mxu0
    %v194 = vld [vmem:[#allocation2] sm:$0xff]
    %v195 = vld [vmem:[#allocation2 + $0x8] sm:$0xff]
    %v196 = vld [vmem:[#allocation2 + $0x10] sm:$0xff]
    %v197 = vld [vmem:[#allocation2 + $0x18] sm:$0xff]
    %v198 = vld [vmem:[#allocation2 + $0x20] sm:$0xff]
    %v199 = vld [vmem:[#allocation2 + $0x28] sm:$0xff]
    %v200 = vld [vmem:[#allocation2 + $0x30] sm:$0xff]
    %v201 = vld [vmem:[#allocation2 + $0x38] sm:$0xff]
    %v202 = vld [vmem:[#allocation2 + $0x40] sm:$0xff]
    %v203 = vld [vmem:[#allocation2 + $0x48] sm:$0xff]
    %v204 = vld [vmem:[#allocation2 + $0x50] sm:$0xff]
    %v205 = vld [vmem:[#allocation2 + $0x58] sm:$0xff]
    %v206 = vld [vmem:[#allocation2 + $0x60] sm:$0xff]
    %v207 = vld [vmem:[#allocation2 + $0x68] sm:$0xff]
    %v208 = vld [vmem:[#allocation2 + $0x70] sm:$0xff]
    %v209 = vld [vmem:[#allocation2 + $0x78] sm:$0xff]
    %v212 = vrot.slane %v71, 7
    %vm213 = vcmask 1041409
    %v214 = vsel %vm213, %v212, %v69
    %216 = vmatprep.subr.mxu0 0.0
    %217 = vmatpush1.msra.mxu0 %v194
    %218 = vmatprep.subr.mxu0 0.0
    %219 = vmatpush1.msra.mxu0 %v195
    %220 = vmatprep.subr.mxu0 0.0
    %221 = vmatpush1.msra.mxu0 %v196
    %222 = vmatprep.subr.mxu0 0.0
    %223 = vmatpush1.msra.mxu0 %v197
    %224 = vmatprep.subr.mxu0 0.0
    %225 = vmatpush1.msra.mxu0 %v198
    %226 = vmatprep.subr.mxu0 0.0
    %227 = vmatpush1.msra.mxu0 %v199
    %228 = vmatprep.subr.mxu0 0.0
    %229 = vmatpush1.msra.mxu0 %v200
    %230 = vmatprep.subr.mxu0 0.0
    %231 = vmatpush1.msra.mxu0 %v201
    %232 = vmatprep.subr.mxu0 0.0
    %233 = vmatpush1.msra.mxu0 %v202
    %234 = vmatprep.subr.mxu0 0.0
    %235 = vmatpush1.msra.mxu0 %v203
    %236 = vmatprep.subr.mxu0 0.0
    %237 = vmatpush1.msra.mxu0 %v204
    %238 = vmatprep.subr.mxu0 0.0
    %239 = vmatpush1.msra.mxu0 %v205
    %240 = vmatprep.subr.mxu0 0.0
    %241 = vmatpush1.msra.mxu0 %v206
    %242 = vmatprep.subr.mxu0 0.0
    %243 = vmatpush1.msra.mxu0 %v207
    %244 = vmatprep.subr.mxu0 0.0
    %245 = vmatpush1.msra.mxu0 %v208
    %246 = vmatprep.subr.mxu0 0.0
    %247 = vmatpush1.msra.mxu0 %v209
    %248 = vmatprep.subr.mxu0 0.0
    %249 = vmatpush1.msra.mxu0 0.0
    %250 = vmatprep.subr.mxu0 0.0
    %251 = vmatpush1.msra.mxu0 0.0
    %252 = vmatprep.subr.mxu0 0.0
    %253 = vmatpush1.msra.mxu0 0.0
    %254 = vmatprep.subr.mxu0 0.0
    %255 = vmatpush1.msra.mxu0 0.0
    %256 = vmatprep.subr.mxu0 0.0
    %257 = vmatpush1.msra.mxu0 0.0
    %258 = vmatprep.subr.mxu0 0.0
    %259 = vmatpush1.msra.mxu0 0.0
    %260 = vmatprep.subr.mxu0 0.0
    %261 = vmatpush1.msra.mxu0 0.0
    %262 = vmatprep.subr.mxu0 0.0
    %263 = vmatpush1.msra.mxu0 0.0
    %264 = vmatprep.subr.mxu0 0.0
    %265 = vmatpush1.msra.mxu0 0.0
    %266 = vmatprep.subr.mxu0 0.0
    %267 = vmatpush1.msra.mxu0 0.0
    %268 = vmatprep.subr.mxu0 0.0
    %269 = vmatpush1.msra.mxu0 0.0
    %270 = vmatprep.subr.mxu0 0.0
    %271 = vmatpush1.msra.mxu0 0.0
    %272 = vmatprep.subr.mxu0 0.0
    %273 = vmatpush1.msra.mxu0 0.0
    %274 = vmatprep.subr.mxu0 0.0
    %275 = vmatpush1.msra.mxu0 0.0
    %276 = vmatprep.subr.mxu0 0.0
    %277 = vmatpush1.msra.mxu0 0.0
    %278 = vmatprep.subr.mxu0 0.0
    %279 = vmatpush1.msra.mxu0 0.0
    %280 = vmatprep.mubr.f32.mxu0 0.0
    %281 = vmatmul.mubr.f32.gmra.mrb[0].mxu0 %v214
    %v282 = vpop.f32.mrb[0].mxu0
    %v283 = vadd.f32 0.0, %v282
    %v284 = vpop.f32.mrb[0].mxu0
    %285 = vdwg.mxu0
    %v288 = vunpack.c.l.s4 1966171168
    %v289 = vunpack.c.0.s8 %v288
    %v290 = vlaneseq
    %v291 = vshrl.u32 %v290, 7
    %v292 = vsub.s32 %v289, %v291
    %v293 = vrot.slane %v283, %v292
    %v294 = vcombine.high %v293, %v293
    %v296 = vunpack.c.l.s4 1966171168
    %v297 = vunpack.c.0.s8 %v296
    %v298 = vlaneseq
    %v299 = vshrl.u32 %v298, 7
    %v300 = vsub.s32 %v297, %v299
    %v301 = vrot.slane %v293, %v300
    %v303 = vunpack.c.l.s4 1966171168
    %v304 = vunpack.c.0.s8 %v303
    %v305 = vlaneseq
    %v306 = vshrl.u32 %v305, 7
    %v307 = vsub.s32 %v304, %v306
    %v308 = vrot.slane %v294, %v307
    %v309 = vlaneseq
    %v310 = vshrl.u32 %v309, 7
    %v311 = vsub.s32 0, %v310
    %v312 = vrot.slane %v301, %v311
    %v313 = vlaneseq
    %v314 = vshrl.u32 %v313, 7
    %v315 = vsub.s32 0, %v314
    %v316 = vrot.slane %v308, %v315
    %v319 = vmul.f32 %v172, %v312
    %v320 = vmul.f32 %v178, %v312
    %v321 = vmul.f32 %v184, %v316
    %v322 = vmul.f32 %v190, %v316
    %v323 = vpack.c.bf16 %v320, %v319
    %v324 = vpack.c.bf16 %v322, %v321
    %v325 = vld [vmem:[%s5] sm:$0xf]
    %v326 = vld [vmem:[%s5 + $0x4] sm:$0xf]
    %v327 = vld [vmem:[%s5 + $0x8] sm:$0xf]
    %v328 = vld [vmem:[%s5 + $0xc] sm:$0xf]
    %v329 = vld [vmem:[%s5 + $0x10] sm:$0xf]
    %v330 = vld [vmem:[%s5 + $0x14] sm:$0xf]
    %v331 = vld [vmem:[%s5 + $0x18] sm:$0xf]
    %v332 = vld [vmem:[%s5 + $0x1c] sm:$0xf]
    %v333 = vld [vmem:[%s5 + $0x20] sm:$0xf]
    %v334 = vld [vmem:[%s5 + $0x24] sm:$0xf]
    %v335 = vld [vmem:[%s5 + $0x28] sm:$0xf]
    %v336 = vld [vmem:[%s5 + $0x2c] sm:$0xf]
    %v337 = vld [vmem:[%s5 + $0x30] sm:$0xf]
    %v338 = vld [vmem:[%s5 + $0x34] sm:$0xf]
    %v339 = vld [vmem:[%s5 + $0x38] sm:$0xf]
    %v340 = vld [vmem:[%s5 + $0x3c] sm:$0xf]
    %v357 = vunpack.c.l.b16 %v325
    %v358 = vunpack.c.l.b16 %v326
    %v359 = vunpack.c.l.b16 %v327
    %v360 = vunpack.c.l.b16 %v328
    %v361 = vunpack.c.l.b16 %v329
    %v362 = vunpack.c.l.b16 %v330
    %v363 = vunpack.c.l.b16 %v331
    %v364 = vunpack.c.l.b16 %v332
    %v365 = vunpack.c.l.b16 %v333
    %v366 = vunpack.c.l.b16 %v334
    %v367 = vunpack.c.l.b16 %v335
    %v368 = vunpack.c.l.b16 %v336
    %v369 = vunpack.c.l.b16 %v337
    %v370 = vunpack.c.l.b16 %v338
    %v371 = vunpack.c.l.b16 %v339
    %v372 = vunpack.c.l.b16 %v340
    %v373 = vpack.c.b16 %v358, %v357
    %v374 = vpack.c.b16 %v360, %v359
    %v375 = vpack.c.b16 %v362, %v361
    %v376 = vpack.c.b16 %v364, %v363
    %v377 = vpack.c.b16 %v366, %v365
    %v378 = vpack.c.b16 %v368, %v367
    %v379 = vpack.c.b16 %v370, %v369
    %v380 = vpack.c.b16 %v372, %v371
    %389 = vmatprep.subr.bf16.mxu0 0
    %390 = vmatpush1.bf16.msra.mxu0 %v373
    %391 = vmatprep.subr.bf16.mxu0 0
    %392 = vmatpush1.bf16.msra.mxu0 %v374
    %393 = vmatprep.subr.bf16.mxu0 0
    %394 = vmatpush1.bf16.msra.mxu0 %v375
    %395 = vmatprep.subr.bf16.mxu0 0
    %396 = vmatpush1.bf16.msra.mxu0 %v376
    %397 = vmatprep.subr.bf16.mxu0 0
    %398 = vmatpush1.bf16.msra.mxu0 %v377
    %399 = vmatprep.subr.bf16.mxu0 0
    %400 = vmatpush1.bf16.msra.mxu0 %v378
    %401 = vmatprep.subr.bf16.mxu0 0
    %402 = vmatpush1.bf16.msra.mxu0 %v379
    %403 = vmatprep.subr.bf16.mxu0 0
    %404 = vmatpush1.bf16.msra.mxu0 %v380
    %405 = vmatprep.subr.bf16.mxu0 0
    %406 = vmatpush1.bf16.msra.mxu0 0
    %407 = vmatprep.subr.bf16.mxu0 0
    %408 = vmatpush1.bf16.msra.mxu0 0
    %409 = vmatprep.subr.bf16.mxu0 0
    %410 = vmatpush1.bf16.msra.mxu0 0
    %411 = vmatprep.subr.bf16.mxu0 0
    %412 = vmatpush1.bf16.msra.mxu0 0
    %413 = vmatprep.subr.bf16.mxu0 0
    %414 = vmatpush1.bf16.msra.mxu0 0
    %415 = vmatprep.subr.bf16.mxu0 0
    %416 = vmatpush1.bf16.msra.mxu0 0
    %417 = vmatprep.subr.bf16.mxu0 0
    %418 = vmatpush1.bf16.msra.mxu0 0
    %419 = vmatprep.subr.bf16.mxu0 0
    %420 = vmatpush1.bf16.msra.mxu0 0
    %421 = vmatprep.mubr.bf16.mxu0 0
    %422 = vmatmul.mubr.bf16.gmra.mrb[0].mxu0 %v323
    %v423 = vpop.f32.mrb[0].mxu0
    %v424 = vadd.f32 0.0, %v423
    %v425 = vpop.f32.mrb[0].mxu0
    %v426 = vpop.f32.mrb[0].mxu0
    %v427 = vadd.f32 0.0, %v426
    %v428 = vpop.f32.mrb[0].mxu0
    %429 = vmatprep.mubr.bf16.mxu0 0
    %430 = vmatmul.mubr.bf16.gmra.mrb[0].mxu0 %v324
    %v431 = vpop.f32.mrb[0].mxu0
    %v432 = vadd.f32 0.0, %v431
    %v433 = vpop.f32.mrb[0].mxu0
    %v434 = vpop.f32.mrb[0].mxu0
    %v435 = vadd.f32 0.0, %v434
    %v436 = vpop.f32.mrb[0].mxu0
    %437 = vdwg.mxu0
    %vm438 = vcmask 64512
    %v439 = vsel %vm438, %v424, -inf
    %v440 = vsel %vm438, %v427, -inf
    %v441 = vmax.f32 %v439, %v440
    %v442 = vrot.slane %v441, 4
    %v443 = vmax.f32 %v441, %v442
    %v444 = vrot.slane %v443, 2
    %v445 = vmax.f32 %v443, %v444
    %v446 = vrot.slane %v445, 1
    %v447 = vmax.f32 %v445, %v446
    %v448 = vsel %vm438, %v432, -inf
    %v449 = vsel %vm438, %v435, -inf
    %v450 = vmax.f32 %v448, %v449
    %v451 = vrot.slane %v450, 4
    %v452 = vmax.f32 %v450, %v451
    %v453 = vrot.slane %v452, 2
    %v454 = vmax.f32 %v452, %v453
    %v455 = vrot.slane %v454, 1
    %v456 = vmax.f32 %v454, %v455
    %v457 = vsub.f32 %v424, %v447
    %v458 = vsub.f32 %v427, %v447
    %v459 = vsub.f32 %v432, %v456
    %v460 = vsub.f32 %v435, %v456
    %v461 = vmul.f32 %v457, 1.442695
    %v462 = vpow.pop %v461
    %v463 = vmul.f32 %v458, 1.442695
    %v464 = vpow.pop %v463
    %v465 = vmul.f32 %v459, 1.442695
    %v466 = vpow.pop %v465
    %v467 = vmul.f32 %v460, 1.442695
    %v468 = vpow.pop %v467
    %v469 = vsel %vm438, %v462, 0.0
    %v470 = vsel %vm438, %v464, 0.0
    %v471 = vadd.f32 %v469, %v470
    %v472 = vrot.slane %v471, 4
    %v473 = vadd.f32 %v471, %v472
    %v474 = vrot.slane %v473, 2
    %v475 = vadd.f32 %v473, %v474
    %v476 = vrot.slane %v475, 1
    %v477 = vadd.f32 %v475, %v476
    %v478 = vsel %vm438, %v466, 0.0
    %v479 = vsel %vm438, %v468, 0.0
    %v480 = vadd.f32 %v478, %v479
    %v481 = vrot.slane %v480, 4
    %v482 = vadd.f32 %v480, %v481
    %v483 = vrot.slane %v482, 2
    %v484 = vadd.f32 %v482, %v483
    %v485 = vrot.slane %v484, 1
    %v486 = vadd.f32 %v484, %v485
    %v487 = vrcp.pop %v477
    %v488 = vrcp.pop %v486
    %v489 = vmul.f32 %v462, %v487
    %v490 = vmul.f32 %v464, %v487
    %v491 = vmul.f32 %v466, %v488
    %v492 = vmul.f32 %v468, %v488
    %v493 = vpack.c.bf16 %v490, %v489
    %v494 = vpack.c.bf16 %v492, %v491
    %v495 = vld [vmem:[%s6] sm:$0xf]
    %v497 = vsel %vm438, %v493, 0
    %v500 = vsel %vm438, %v494, 0
    %vm502 = vcmask 1043456
    %v504 = vsel %vm502, %v495, 0
    %506 = vmatprep.subr.bf16.mxu0 0
    %507 = vmatpush1.bf16.msra.mxu0 %v504
    %508 = vmatprep.subr.bf16.mxu0 0
    %509 = vmatpush1.bf16.msra.mxu0 0
    %510 = vmatprep.subr.bf16.mxu0 0
    %511 = vmatpush1.bf16.msra.mxu0 0
    %512 = vmatprep.subr.bf16.mxu0 0
    %513 = vmatpush1.bf16.msra.mxu0 0
    %514 = vmatprep.subr.bf16.mxu0 0
    %515 = vmatpush1.bf16.msra.mxu0 0
    %516 = vmatprep.subr.bf16.mxu0 0
    %517 = vmatpush1.bf16.msra.mxu0 0
    %518 = vmatprep.subr.bf16.mxu0 0
    %519 = vmatpush1.bf16.msra.mxu0 0
    %520 = vmatprep.subr.bf16.mxu0 0
    %521 = vmatpush1.bf16.msra.mxu0 0
    %522 = vmatprep.subr.bf16.mxu0 0
    %523 = vmatpush1.bf16.msra.mxu0 0
    %524 = vmatprep.subr.bf16.mxu0 0
    %525 = vmatpush1.bf16.msra.mxu0 0
    %526 = vmatprep.subr.bf16.mxu0 0
    %527 = vmatpush1.bf16.msra.mxu0 0
    %528 = vmatprep.subr.bf16.mxu0 0
    %529 = vmatpush1.bf16.msra.mxu0 0
    %530 = vmatprep.subr.bf16.mxu0 0
    %531 = vmatpush1.bf16.msra.mxu0 0
    %532 = vmatprep.subr.bf16.mxu0 0
    %533 = vmatpush1.bf16.msra.mxu0 0
    %534 = vmatprep.subr.bf16.mxu0 0
    %535 = vmatpush1.bf16.msra.mxu0 0
    %536 = vmatprep.subr.bf16.mxu0 0
    %537 = vmatpush1.bf16.msra.mxu0 0
    %538 = vmatprep.mubr.bf16.mxu0 0
    %539 = vmatmul.mubr.bf16.gmra.mrb[0].mxu0 %v497
    %v540 = vpop.f32.mrb[0].mxu0
    %v541 = vadd.f32 0.0, %v540
    %v542 = vpop.f32.mrb[0].mxu0
    %v543 = vpop.f32.mrb[0].mxu0
    %v544 = vadd.f32 0.0, %v543
    %v545 = vpop.f32.mrb[0].mxu0
    %546 = vmatprep.mubr.bf16.mxu0 0
    %547 = vmatmul.mubr.bf16.gmra.mrb[0].mxu0 %v500
    %v548 = vpop.f32.mrb[0].mxu0
    %v549 = vadd.f32 0.0, %v548
    %v550 = vpop.f32.mrb[0].mxu0
    %v551 = vpop.f32.mrb[0].mxu0
    %v552 = vadd.f32 0.0, %v551
    %v553 = vpop.f32.mrb[0].mxu0
    %554 = vdwg.mxu0
    %v555 = vmul.f32 %v541, %v174
    %v556 = vmul.f32 %v544, %v180
    %v557 = vmul.f32 %v549, %v186
    %v558 = vmul.f32 %v552, %v192
    %v559 = vadd.f32 %v555, %v556
    %v560 = vrot.slane %v559, 4
    %v561 = vadd.f32 %v559, %v560
    %v562 = vrot.slane %v561, 2
    %v563 = vadd.f32 %v561, %v562
    %v564 = vrot.slane %v563, 1
    %v565 = vadd.f32 %v563, %v564
    %v566 = vadd.f32 %v557, %v558
    %v567 = vrot.slane %v566, 4
    %v568 = vadd.f32 %v566, %v567
    %v569 = vrot.slane %v568, 2
    %v570 = vadd.f32 %v568, %v569
    %v571 = vrot.slane %v570, 1
    %v572 = vadd.f32 %v570, %v571
    %v573 = vld [vmem:[#allocation7] sm:$0xff]
    %v574 = vld [vmem:[#allocation7 + $0x8] sm:$0xff]
    %v575 = vld [vmem:[#allocation7 + $0x10] sm:$0xff]
    %v576 = vld [vmem:[#allocation7 + $0x18] sm:$0xff]
    %v577 = vld [vmem:[#allocation7 + $0x20] sm:$0xff]
    %v578 = vld [vmem:[#allocation7 + $0x28] sm:$0xff]
    %v579 = vld [vmem:[#allocation7 + $0x30] sm:$0xff]
    %v580 = vld [vmem:[#allocation7 + $0x38] sm:$0xff]
    %v581 = vld [vmem:[#allocation7 + $0x40] sm:$0xff]
    %v582 = vld [vmem:[#allocation7 + $0x48] sm:$0xff]
    %v583 = vld [vmem:[#allocation7 + $0x50] sm:$0xff]
    %v584 = vld [vmem:[#allocation7 + $0x58] sm:$0xff]
    %v585 = vld [vmem:[#allocation7 + $0x60] sm:$0xff]
    %v586 = vld [vmem:[#allocation7 + $0x68] sm:$0xff]
    %v587 = vld [vmem:[#allocation7 + $0x70] sm:$0xff]
    %v588 = vld [vmem:[#allocation7 + $0x78] sm:$0xff]
    %v589 = vld [vmem:[%s4] sm:$0x1]
    %v591 = vlaneseq
    %v592 = vshrl.u32 %v591, 7
    %v593 = vsub.s32 0, %v592
    %v594 = vrot.slane %v589, %v593
    %v598 = vsel %vm213, %v572, %v565
    %600 = vmatprep.subr.mxu0 0.0
    %601 = vmatpush1.msra.mxu0 %v573
    %602 = vmatprep.subr.mxu0 0.0
    %603 = vmatpush1.msra.mxu0 %v574
    %604 = vmatprep.subr.mxu0 0.0
    %605 = vmatpush1.msra.mxu0 %v575
    %606 = vmatprep.subr.mxu0 0.0
    %607 = vmatpush1.msra.mxu0 %v576
    %608 = vmatprep.subr.mxu0 0.0
    %609 = vmatpush1.msra.mxu0 %v577
    %610 = vmatprep.subr.mxu0 0.0
    %611 = vmatpush1.msra.mxu0 %v578
    %612 = vmatprep.subr.mxu0 0.0
    %613 = vmatpush1.msra.mxu0 %v579
    %614 = vmatprep.subr.mxu0 0.0
    %615 = vmatpush1.msra.mxu0 %v580
    %616 = vmatprep.subr.mxu0 0.0
    %617 = vmatpush1.msra.mxu0 %v581
    %618 = vmatprep.subr.mxu0 0.0
    %619 = vmatpush1.msra.mxu0 %v582
    %620 = vmatprep.subr.mxu0 0.0
    %621 = vmatpush1.msra.mxu0 %v583
    %622 = vmatprep.subr.mxu0 0.0
    %623 = vmatpush1.msra.mxu0 %v584
    %624 = vmatprep.subr.mxu0 0.0
    %625 = vmatpush1.msra.mxu0 %v585
    %626 = vmatprep.subr.mxu0 0.0
    %627 = vmatpush1.msra.mxu0 %v586
    %628 = vmatprep.subr.mxu0 0.0
    %629 = vmatpush1.msra.mxu0 %v587
    %630 = vmatprep.subr.mxu0 0.0
    %631 = vmatpush1.msra.mxu0 %v588
    %632 = vmatprep.subr.mxu0 0.0
    %633 = vmatpush1.msra.mxu0 0.0
    %634 = vmatprep.subr.mxu0 0.0
    %635 = vmatpush1.msra.mxu0 0.0
    %636 = vmatprep.subr.mxu0 0.0
    %637 = vmatpush1.msra.mxu0 0.0
    %638 = vmatprep.subr.mxu0 0.0
    %639 = vmatpush1.msra.mxu0 0.0
    %640 = vmatprep.subr.mxu0 0.0
    %641 = vmatpush1.msra.mxu0 0.0
    %642 = vmatprep.subr.mxu0 0.0
    %643 = vmatpush1.msra.mxu0 0.0
    %644 = vmatprep.subr.mxu0 0.0
    %645 = vmatpush1.msra.mxu0 0.0
    %646 = vmatprep.subr.mxu0 0.0
    %647 = vmatpush1.msra.mxu0 0.0
    %648 = vmatprep.subr.mxu0 0.0
    %649 = vmatpush1.msra.mxu0 0.0
    %650 = vmatprep.subr.mxu0 0.0
    %651 = vmatpush1.msra.mxu0 0.0
    %652 = vmatprep.subr.mxu0 0.0
    %653 = vmatpush1.msra.mxu0 0.0
    %654 = vmatprep.subr.mxu0 0.0
    %655 = vmatpush1.msra.mxu0 0.0
    %656 = vmatprep.subr.mxu0 0.0
    %657 = vmatpush1.msra.mxu0 0.0
    %658 = vmatprep.subr.mxu0 0.0
    %659 = vmatpush1.msra.mxu0 0.0
    %660 = vmatprep.subr.mxu0 0.0
    %661 = vmatpush1.msra.mxu0 0.0
    %662 = vmatprep.subr.mxu0 0.0
    %663 = vmatpush1.msra.mxu0 0.0
    %664 = vmatprep.mubr.f32.mxu0 0.0
    %665 = vmatmul.mubr.f32.gmra.mrb[0].mxu0 %v598
    %v666 = vpop.f32.mrb[0].mxu0
    %v667 = vadd.f32 %v594, %v666
    %v668 = vpop.f32.mrb[0].mxu0
    %669 = vdwg.mxu0
    %670 = vst [vmem:[#allocation8] sm:$0x3] %v667
    // Predicated region
    $region42: #{tpu_custom_call.1} parent=1 // pred_check
      _
    $region43: #{tpu_custom_call.1} parent=1 // pred_check_branch
      %672 = sbr.rel (0) target = $region45
    $region44: #{tpu_custom_call.1} parent=1 // pred_region
      %s674 = ssub.s32 32, 32
      %675 = vsyncadd [#allocation4], %s674
      %s677 = sshll.u32 [#allocation8], 4
      %s678 = int_to_ptr.vmem [resolvable:$true] %s677
      %680 = dma.vmem_to_hbm [thread:$0]  %s678, 32, %s7, [#allocation4]
    $region45: #{tpu_custom_call.1} parent=1 // pred_fallthru
      _
    // Predicated region
    $region46: #{tpu_custom_call.1} parent=1 // pred_check
      _
    $region47: #{tpu_custom_call.1} parent=1 // pred_check_branch
      %682 = sbr.rel (0) target = $region49
    $region48: #{tpu_custom_call.1} parent=1 // pred_region
      %683 = dma.done [#allocation4], 32
    $region49: #{tpu_custom_call.1} parent=1 // pred_fallthru
      _
    %684 = vsyncpa [#allocation3], 1
    %685 = vsyncpa [#allocation6], 1
    %686 = vsyncpa [#allocation4], 1

</llo_original>
